<compile_context>
chip_gen: v7x
topology: tpu7x:2x2x1
jax: 0.10.0
libtpu: 0.0.40
codegen_flags: <defaults>
</compile_context>

<pallas_src>
import jax
import jax.numpy as jnp
from jax.experimental import pallas as pl
from jax.experimental.pallas import tpu as pltpu

# ----------------------------- config ---------------------------------------
B = 2            # batch
S = 256          # sequence length
V = 128          # vocab size (includes pad + mask tokens) -- lane-aligned
D = 128          # model hidden dim                         -- lane-aligned
H = 256          # mlp hidden dim                           -- lane-aligned
PAD_ID = 0
MASK_ID = V - 1
TM = 256         # tokens per grid step (lane tile); B*S must be divisible by TM


# ----------------------------- Pallas kernel --------------------------------
def _loss_kernel(et_ref, temb_ref, w1t_ref, w2t_ref,
                 zt_ref, t_ref, tgt_ref, wgt_ref, wnll_ref):
    # One vocab iota, reused for the one-hot embedding lookup and the target
    # logit extraction (grid-invariant; built once per step, no reliance on
    # Mosaic hoisting separate copies).
    vocab_iota = jax.lax.broadcasted_iota(jnp.int32, (V, TM), 0)

    # ---- in-kernel model-input construction:  x = embed[z_t] + t * time_emb
    zt = zt_ref[...]                                            # (1, TM) int32
    onehot_z = (vocab_iota == zt).astype(jnp.bfloat16)          # (V, TM) bf16
    x = jnp.dot(et_ref[...], onehot_z,
                preferred_element_type=jnp.float32)             # (D, TM) f32 gather
    x = x + temb_ref[...] * t_ref[...]                          # (D,1)*(1,TM) broadcast
    x = x.astype(jnp.bfloat16)                                  # autocast-style cast

    # ---- MLP: bf16 MXU inputs, f32 accumulation; GELU on the bf16 path.
    h = jnp.dot(w1t_ref[...], x,
                preferred_element_type=jnp.float32)             # (H, TM) f32
    h = jax.nn.gelu(h.astype(jnp.bfloat16), approximate=True)   # bf16 gelu (tanh, explicit)
    logits = jnp.dot(w2t_ref[...], h,
                     preferred_element_type=jnp.float32)        # (V, TM) f32

    # ---- numerically stable log-softmax CE in f32.  Vocab is on SUBLANES, so
    # every per-token reduction is naturally lane-major (1, TM): no transposes,
    # lane-dense write-once output.  `shifted` is computed once and reused.
    m = jnp.max(logits, axis=0, keepdims=True)                  # (1, TM)
    shifted = logits - m                                        # (V, TM)
    lse_term = jnp.log(jnp.sum(jnp.exp(shifted), axis=0, keepdims=True))  # (1, TM)

    tgt = tgt_ref[...]                                          # (1, TM) int32
    # TODO(synk): targets outside [0, V) would silently read 0 here; safe because
    #             synthetic targets are in-range and padded rows carry zero weight.
    tgt_shifted = jnp.sum(jnp.where(vocab_iota == tgt, shifted, 0.0),
                          axis=0, keepdims=True)                # (1, TM)
    nll = lse_term - tgt_shifted                                # = lse - tgt_logit

    # Lane-dense, write-once output: per-token weighted NLL for this tile.
    wnll_ref[...] = wgt_ref[...] * nll


def fused_model_loss(et, temb, w1_t, w2_t, zt_row, t_row, tgt_row, w_row):
    """et: (D, V) bf16; temb: (D, 1) f32; w1_t: (H, D) bf16; w2_t: (V, H) bf16;
    zt_row/tgt_row: (1, N) int32; t_row/w_row: (1, N) f32.
    Returns per-token weighted NLL of shape (1, N) f32."""
    n_tokens = zt_row.shape[1]
    assert n_tokens % TM == 0
    grid = (n_tokens // TM,)
    return pl.pallas_call(
        _loss_kernel,
        out_shape=jax.ShapeDtypeStruct((1, n_tokens), jnp.float32),
        grid_spec=pltpu.PrefetchScalarGridSpec(
            num_scalar_prefetch=0,
            grid=grid,
            in_specs=[
                pl.BlockSpec((D, V), lambda i: (0, 0)),    # embed^T (resident)
                pl.BlockSpec((D, 1), lambda i: (0, 0)),    # time_emb column (resident)
                pl.BlockSpec((H, D), lambda i: (0, 0)),    # W1^T (resident)
                pl.BlockSpec((V, H), lambda i: (0, 0)),    # W2^T (resident)
                pl.BlockSpec((1, TM), lambda i: (0, i)),   # z_t ids   (lane-dense)
                pl.BlockSpec((1, TM), lambda i: (0, i)),   # t per tok (lane-dense)
                pl.BlockSpec((1, TM), lambda i: (0, i)),   # targets   (lane-dense)
                pl.BlockSpec((1, TM), lambda i: (0, i)),   # weights   (lane-dense)
            ],
            out_specs=pl.BlockSpec((1, TM), lambda i: (0, i)),  # per-token w*nll
        ),
        compiler_params=pltpu.CompilerParams(
            dimension_semantics=("parallel",)),            # no carried state -> v7x 2-TC
    )(et, temb, w1_t, w2_t, zt_row, t_row, tgt_row, w_row)


# ----------------------------- trainer forward -------------------------------
def init_params(key):
    k_e, k_t, k_1, k_2 = jax.random.split(key, 4)
    return {
        "embed": jax.random.normal(k_e, (V, D), jnp.float32) * 0.02,
        "time_emb": jax.random.normal(k_t, (D,), jnp.float32) * 0.02,
        "w1": jax.random.normal(k_1, (D, H), jnp.float32) * (1.0 / jnp.sqrt(D)),
        "w2": jax.random.normal(k_2, (H, V), jnp.float32) * (1.0 / jnp.sqrt(H)),
    }


@jax.jit
def diffusion_trainer_forward(params, input_ids, attention_mask, key):
    """Mirrors DiffusionTrainer.forward(batch) -> (loss, metrics)."""
    batch_size, seq_len = input_ids.shape
    k_t, k_z = jax.random.split(key)

    # sample_t: low-discrepancy per-example diffusion time in (0, 1)
    u = jax.random.uniform(k_t, ())
    t = jnp.remainder(jnp.arange(batch_size, dtype=jnp.float32) / batch_size + u, 1.0)
    t = jnp.clip(t, 1e-3, 1.0 - 1e-3)

    # noise_schedule.sample_zt: mask tokens with probability t (masked diffusion)
    rand = jax.random.uniform(k_z, (batch_size, seq_len))
    z_t = jnp.where(rand < t[:, None], MASK_ID, input_ids)
    # target_features == clean input_ids (integer class targets)

    # loss_fn weights: ELBO weight 1/t on masked positions, gated by attention_mask
    elbo_w = jnp.where(z_t == MASK_ID, 1.0 / t[:, None], 0.0)
    elbo_w = elbo_w * attention_mask.astype(jnp.float32)

    n = batch_size * seq_len
    # Only weight-sized transposes + tiny lane-dense rows remain wrapper-side;
    # the N*D gather/transpose/cast now lives inside the kernel.
    et = params["embed"].T.astype(jnp.bfloat16)            # (D, V)
    temb = params["time_emb"][:, None].astype(jnp.float32) # (D, 1)
    w1_t = params["w1"].T.astype(jnp.bfloat16)             # (H, D)
    w2_t = params["w2"].T.astype(jnp.bfloat16)             # (V, H)
    zt_row = z_t.reshape(1, n).astype(jnp.int32)           # (1, N)
    t_row = jnp.broadcast_to(t[:, None], (batch_size, seq_len)).reshape(1, n)  # (1, N)
    tgt_row = input_ids.reshape(1, n).astype(jnp.int32)    # (1, N)
    w_row = elbo_w.reshape(1, n).astype(jnp.float32)       # (1, N)

    wnll = fused_model_loss(et, temb, w1_t, w2_t,
                            zt_row, t_row, tgt_row, w_row)  # (1, N) f32

    num = jnp.sum(wnll)                       # weighted NLL sum (reduced in f32, in JAX)
    den = jnp.sum(w_row)                      # weight sum
    loss = num / jnp.maximum(den, 1e-6)       # "mean" reduction

    metrics = {
        "loss": loss,
        "weighted_nll_sum": num,
        "weight_sum": den,
        "mask_frac": jnp.mean((z_t == MASK_ID).astype(jnp.float32)),
        "t_mean": jnp.mean(t),
    }
    return loss, metrics


# ----------------------------- main ------------------------------------------
if __name__ == "__main__":
    key = jax.random.PRNGKey(0)
    k_params, k_data, k_fwd = jax.random.split(key, 3)

    params = init_params(k_params)

    # deterministic synthetic batch (avoid PAD_ID and MASK_ID in clean tokens)
    input_ids = jax.random.randint(k_data, (B, S), 1, V - 1, dtype=jnp.int32)
    attention_mask = jnp.ones((B, S), dtype=jnp.int32)

    loss, metrics = diffusion_trainer_forward(params, input_ids, attention_mask, k_fwd)
    loss = jax.block_until_ready(loss)
    jax.block_until_ready(metrics)

    assert jnp.isfinite(loss), "loss is not finite"
    print("KERNEL_OK")
</pallas_src>

<mosaic_0001>
module attributes {stable_mosaic.version = 11 : i64} {
  func.func @_loss_kernel(%arg0: i32, %arg1: memref<128x128xbf16, #tpu.memory_space<vmem>>, %arg2: memref<128x1xf32, #tpu.memory_space<vmem>>, %arg3: memref<256x128xbf16, #tpu.memory_space<vmem>>, %arg4: memref<128x256xbf16, #tpu.memory_space<vmem>>, %arg5: memref<1x256xi32, #tpu.memory_space<vmem>>, %arg6: memref<1x256xf32, #tpu.memory_space<vmem>>, %arg7: memref<1x256xi32, #tpu.memory_space<vmem>>, %arg8: memref<1x256xf32, #tpu.memory_space<vmem>>, %arg9: memref<1x256xf32, #tpu.memory_space<vmem>>) attributes {dimension_semantics = [#tpu.dimension_semantics<parallel>], iteration_bounds = array<i64: 2>, scalar_prefetch = 0 : i64, scratch_operands = 0 : i64, tpu.core_type = #tpu.core_type<tc>, window_params = [{pipeline_mode = #tpu.pipeline_mode<synchronous>, transform_indices = @transform_0, window_bounds = array<i64: 128, 128>}, {pipeline_mode = #tpu.pipeline_mode<synchronous>, transform_indices = @transform_1, window_bounds = array<i64: 128, 1>}, {pipeline_mode = #tpu.pipeline_mode<synchronous>, transform_indices = @transform_2, window_bounds = array<i64: 256, 128>}, {pipeline_mode = #tpu.pipeline_mode<synchronous>, transform_indices = @transform_3, window_bounds = array<i64: 128, 256>}, {transform_indices = @transform_4, window_bounds = array<i64: 1, 256>}, {transform_indices = @transform_5, window_bounds = array<i64: 1, 256>}, {transform_indices = @transform_6, window_bounds = array<i64: 1, 256>}, {transform_indices = @transform_7, window_bounds = array<i64: 1, 256>}, {transform_indices = @transform_8, window_bounds = array<i64: 1, 256>}]} {
    %0 = tpu.iota {dimensions = array<i32: 0>} : vector<128x256xi32>
    %c0 = arith.constant 0 : index
    %c0_0 = arith.constant 0 : index
    %1 = vector.load %arg5[%c0, %c0_0] : memref<1x256xi32, #tpu.memory_space<vmem>>, vector<1x256xi32>
    %2 = vector.broadcast %1 : vector<1x256xi32> to vector<128x256xi32>
    %3 = arith.cmpi eq, %0, %2 : vector<128x256xi32>
    %4 = arith.extui %3 : vector<128x256xi1> to vector<128x256xi32>
    %5 = arith.sitofp %4 : vector<128x256xi32> to vector<128x256xf32>
    %6 = arith.truncf %5 : vector<128x256xf32> to vector<128x256xbf16>
    %c0_1 = arith.constant 0 : index
    %c0_2 = arith.constant 0 : index
    %7 = vector.load %arg1[%c0_1, %c0_2] : memref<128x128xbf16, #tpu.memory_space<vmem>>, vector<128x128xbf16>
    %cst = arith.constant dense<0.000000e+00> : vector<128x256xf32>
    %8 = tpu.matmul %7, %6, %cst {dimension_numbers = #tpu.dot_dimension_numbers<[1], [0], [0], [1], [0, 0, 1, 1], [], []>} : vector<128x128xbf16>, vector<128x256xbf16>, vector<128x256xf32> -> vector<128x256xf32>
    %c0_3 = arith.constant 0 : index
    %c0_4 = arith.constant 0 : index
    %9 = vector.load %arg2[%c0_3, %c0_4] : memref<128x1xf32, #tpu.memory_space<vmem>>, vector<128x1xf32>
    %c0_5 = arith.constant 0 : index
    %c0_6 = arith.constant 0 : index
    %10 = vector.load %arg6[%c0_5, %c0_6] : memref<1x256xf32, #tpu.memory_space<vmem>>, vector<1x256xf32>
    %11 = vector.broadcast %9 : vector<128x1xf32> to vector<128x256xf32>
    %12 = vector.broadcast %10 : vector<1x256xf32> to vector<128x256xf32>
    %13 = arith.mulf %11, %12 : vector<128x256xf32>
    %14 = arith.addf %8, %13 : vector<128x256xf32>
    %15 = arith.truncf %14 : vector<128x256xf32> to vector<128x256xbf16>
    %c0_7 = arith.constant 0 : index
    %c0_8 = arith.constant 0 : index
    %16 = vector.load %arg3[%c0_7, %c0_8] : memref<256x128xbf16, #tpu.memory_space<vmem>>, vector<256x128xbf16>
    %cst_9 = arith.constant dense<0.000000e+00> : vector<256x256xf32>
    %17 = tpu.matmul %16, %15, %cst_9 {dimension_numbers = #tpu.dot_dimension_numbers<[1], [0], [0], [1], [0, 0, 1, 1], [], []>} : vector<256x128xbf16>, vector<128x256xbf16>, vector<256x256xf32> -> vector<256x256xf32>
    %18 = arith.truncf %17 : vector<256x256xf32> to vector<256x256xbf16>
    %19 = arith.mulf %18, %18 : vector<256x256xbf16>
    %20 = arith.mulf %18, %19 : vector<256x256xbf16>
    %cst_10 = arith.constant 4.467770e-02 : bf16
    %21 = vector.broadcast %cst_10 : bf16 to vector<256x256xbf16>
    %22 = arith.mulf %21, %20 : vector<256x256xbf16>
    %23 = arith.addf %18, %22 : vector<256x256xbf16>
    %cst_11 = arith.constant 7.968750e-01 : bf16
    %24 = vector.broadcast %cst_11 : bf16 to vector<256x256xbf16>
    %25 = arith.mulf %24, %23 : vector<256x256xbf16>
    %26 = math.tanh %25 : vector<256x256xbf16>
    %cst_12 = arith.constant 1.000000e+00 : bf16
    %27 = vector.broadcast %cst_12 : bf16 to vector<256x256xbf16>
    %28 = arith.addf %27, %26 : vector<256x256xbf16>
    %cst_13 = arith.constant 5.000000e-01 : bf16
    %29 = vector.broadcast %cst_13 : bf16 to vector<256x256xbf16>
    %30 = arith.mulf %29, %28 : vector<256x256xbf16>
    %31 = arith.mulf %18, %30 : vector<256x256xbf16>
    %c0_14 = arith.constant 0 : index
    %c0_15 = arith.constant 0 : index
    %32 = vector.load %arg4[%c0_14, %c0_15] : memref<128x256xbf16, #tpu.memory_space<vmem>>, vector<128x256xbf16>
    %cst_16 = arith.constant dense<0.000000e+00> : vector<128x256xf32>
    %33 = tpu.matmul %32, %31, %cst_16 {dimension_numbers = #tpu.dot_dimension_numbers<[1], [0], [0], [1], [0, 0, 1, 1], [], []>} : vector<128x256xbf16>, vector<256x256xbf16>, vector<128x256xf32> -> vector<128x256xf32>
    %cst_17 = arith.constant dense<0xFF800000> : vector<256xf32>
    %34 = vector.multi_reduction <maximumf>, %33, %cst_17 [0] : vector<128x256xf32> to vector<256xf32>
    %35 = vector.shape_cast %34 : vector<256xf32> to vector<1x256xf32>
    %36 = vector.broadcast %35 : vector<1x256xf32> to vector<128x256xf32>
    %37 = arith.subf %33, %36 : vector<128x256xf32>
    %38 = math.exp %37 : vector<128x256xf32>
    %cst_18 = arith.constant dense<0.000000e+00> : vector<256xf32>
    %39 = vector.multi_reduction <add>, %38, %cst_18 [0] : vector<128x256xf32> to vector<256xf32>
    %40 = vector.shape_cast %39 : vector<256xf32> to vector<1x256xf32>
    %41 = math.log %40 : vector<1x256xf32>
    %c0_19 = arith.constant 0 : index
    %c0_20 = arith.constant 0 : index
    %42 = vector.load %arg7[%c0_19, %c0_20] : memref<1x256xi32, #tpu.memory_space<vmem>>, vector<1x256xi32>
    %43 = vector.broadcast %42 : vector<1x256xi32> to vector<128x256xi32>
    %44 = arith.cmpi eq, %0, %43 : vector<128x256xi32>
    %cst_21 = arith.constant 0.000000e+00 : f32
    %45 = vector.broadcast %cst_21 : f32 to vector<128x256xf32>
    %46 = arith.select %44, %37, %45 : vector<128x256xi1>, vector<128x256xf32>
    %cst_22 = arith.constant dense<0.000000e+00> : vector<256xf32>
    %47 = vector.multi_reduction <add>, %46, %cst_22 [0] : vector<128x256xf32> to vector<256xf32>
    %48 = vector.shape_cast %47 : vector<256xf32> to vector<1x256xf32>
    %49 = arith.subf %41, %48 : vector<1x256xf32>
    %c0_23 = arith.constant 0 : index
    %c0_24 = arith.constant 0 : index
    %50 = vector.load %arg8[%c0_23, %c0_24] : memref<1x256xf32, #tpu.memory_space<vmem>>, vector<1x256xf32>
    %51 = arith.mulf %50, %49 : vector<1x256xf32>
    %c0_25 = arith.constant 0 : index
    %c0_26 = arith.constant 0 : index
    %52 = vector.load %arg9[%c0_25, %c0_26] : memref<1x256xf32, #tpu.memory_space<vmem>>, vector<1x256xf32>
    tpu.vector_store %arg9[%c0_25, %c0_26], %51 {strides = array<i32>} : memref<1x256xf32, #tpu.memory_space<vmem>>, vector<1x256xf32>,
    return
  }
  func.func @transform_0(%arg0: i32) -> (i32, i32) {
    %c0_i32 = arith.constant 0 : i32
    %c0_i32_0 = arith.constant 0 : i32
    %c0_i32_1 = arith.constant 0 : i32
    return %c0_i32, %c0_i32_0 : i32, i32
  }
  func.func @transform_1(%arg0: i32) -> (i32, i32) {
    %c0_i32 = arith.constant 0 : i32
    %c0_i32_0 = arith.constant 0 : i32
    %c0_i32_1 = arith.constant 0 : i32
    return %c0_i32, %c0_i32_0 : i32, i32
  }
  func.func @transform_2(%arg0: i32) -> (i32, i32) {
    %c0_i32 = arith.constant 0 : i32
    %c0_i32_0 = arith.constant 0 : i32
    %c0_i32_1 = arith.constant 0 : i32
    return %c0_i32, %c0_i32_0 : i32, i32
  }
  func.func @transform_3(%arg0: i32) -> (i32, i32) {
    %c0_i32 = arith.constant 0 : i32
    %c0_i32_0 = arith.constant 0 : i32
    %c0_i32_1 = arith.constant 0 : i32
    return %c0_i32, %c0_i32_0 : i32, i32
  }
  func.func @transform_4(%arg0: i32) -> (i32, i32) {
    %c0_i32 = arith.constant 0 : i32
    %c0_i32_0 = arith.constant 0 : i32
    return %c0_i32, %arg0 : i32, i32
  }
  func.func @transform_5(%arg0: i32) -> (i32, i32) {
    %c0_i32 = arith.constant 0 : i32
    %c0_i32_0 = arith.constant 0 : i32
    return %c0_i32, %arg0 : i32, i32
  }
  func.func @transform_6(%arg0: i32) -> (i32, i32) {
    %c0_i32 = arith.constant 0 : i32
    %c0_i32_0 = arith.constant 0 : i32
    return %c0_i32, %arg0 : i32, i32
  }
  func.func @transform_7(%arg0: i32) -> (i32, i32) {
    %c0_i32 = arith.constant 0 : i32
    %c0_i32_0 = arith.constant 0 : i32
    return %c0_i32, %arg0 : i32, i32
  }
  func.func @transform_8(%arg0: i32) -> (i32, i32) {
    %c0_i32 = arith.constant 0 : i32
    %c0_i32_0 = arith.constant 0 : i32
    return %c0_i32, %arg0 : i32, i32
  }
}

</mosaic_0001>

<llo_original>
// kernel: diffusion_trainer_forward.1
$region0: #{diffusion_trainer_forward.1}
  #allocation0 [shape = 'u32[]', space=smem, size = 0x4, offset = 0x4, fixed_abs, tag = 'smem constant byte address 0x4 - core index']
  #allocation1 [shape = 'u32[144,128]{1,0:T(1,128)}', space=vmem, size = 0x12000, scoped, tag = 'internal scratch']
  %s0 = inlined_call_operand.vmem [shape: bf16[128,128], index: 0, kind: input, shape index: {}]
  %s1 = inlined_call_operand.vmem [shape: f32[128,1], index: 1, kind: input, shape index: {}]
  %s2 = inlined_call_operand.vmem [shape: bf16[256,128], index: 2, kind: input, shape index: {}]
  %s3 = inlined_call_operand.vmem [shape: bf16[128,256], index: 3, kind: input, shape index: {}]
  %s4 = inlined_call_operand.vmem [shape: s32[1,512], index: 4, kind: input, shape index: {}]
  %s5 = inlined_call_operand.vmem [shape: f32[1,512], index: 5, kind: input, shape index: {}]
  %s6 = inlined_call_operand.vmem [shape: s32[1,512], index: 6, kind: input, shape index: {}]
  %s7 = inlined_call_operand.vmem [shape: f32[1,512], index: 7, kind: input, shape index: {}]
  %s8 = inlined_call_operand.vmem [shape: f32[1,512], index: 8, kind: output, shape index: {}]
  %s9 = sld [smem:[#allocation0]]
  $region65: #{diffusion_trainer_forward.1} parent=0
    _
  %s11 = ssub.s32 1, %s9
  %s12 = scalar_select 0, %s11, %s9
  loop: start=0, step=1, limit=4
  $region2: #{diffusion_trainer_forward.1} parent=0 // loop_pre_header
    _
  $region3: #{diffusion_trainer_forward.1} parent=0 // loop_header
    %s14 = sphi 0, %s18
    %p15 = scmp.ge.s32.totalorder %s14, 4
    %s22 = sphi 0, %s22
    %s24 = sphi 0, %s22
    %s25 = sphi 0, %s24
    %s39 = sphi 0, %s25
    %s43 = sphi 0, %s43
    %s45 = sphi 0, %s43
    %s46 = sphi 0, %s45
    %s60 = sphi 0, %s46
    %s64 = sphi 0, %s64
    %s66 = sphi 0, %s64
    %s67 = sphi 0, %s66
    %s81 = sphi 0, %s67
    %s85 = sphi 0, %s85
    %s87 = sphi 0, %s85
    %s88 = sphi 0, %s87
    %s102 = sphi 0, %s88
    %s108 = sphi 0, %s110
    %s111 = sphi 0, %s108
    %s112 = sphi 0, %s111
    %s128 = sphi 0, %s112
    %s134 = sphi 0, %s136
    %s137 = sphi 0, %s134
    %s138 = sphi 0, %s137
    %s154 = sphi 0, %s138
    %s160 = sphi 0, %s162
    %s163 = sphi 0, %s160
    %s164 = sphi 0, %s163
    %s180 = sphi 0, %s164
    %s186 = sphi 0, %s188
    %s189 = sphi 0, %s186
    %s190 = sphi 0, %s189
    %s206 = sphi 0, %s190
    %s212 = sphi 0, %s214
    %s215 = sphi 0, %s212
    %s216 = sphi 0, %s215
    %s232 = sphi 0, %s216
  $region4: #{diffusion_trainer_forward.1} parent=0 // loop_header_branch
    %17 = sbr.rel (%p15) target = $region8
  $region5: #{diffusion_trainer_forward.1} parent=0 // loop_body
    %s19 = ssub.s32 %s14, 1
    %s20 = ssub.s32 %s14, 2
    %s21 = sadd.s32 %s14, 1
    %s23 = sadd.s32 %s22, 1
    %p26 = scmp.eq.s32.totalorder %s14, 1
    %p27 = scmp.ne.s32.totalorder %s22, %s24
    %p28 = scmp.eq.s32.totalorder %s14, 0
    %p29 = por %p27, %p28
    %p30 = scmp.ne.s32.totalorder %s22, %s24
    %p31 = scmp.eq.s32.totalorder %s19, 1
    %p32 = por %p30, %p31
    %p33 = scmp.ne.s32.totalorder %s24, %s25
    %p34 = scmp.eq.s32.totalorder %s19, 0
    %p35 = por %p33, %p34
    %p36 = scmp.ne.s32.totalorder %s24, %s25
    %p37 = scmp.eq.s32.totalorder %s20, 1
    %p38 = por %p36, %p37
    %p40 = scmp.ne.s32.totalorder %s25, %s39
    %p41 = scmp.eq.s32.totalorder %s20, 0
    %p42 = por %p40, %p41
    %s44 = sadd.s32 %s43, 1
    %p47 = scmp.eq.s32.totalorder %s14, 1
    %p48 = scmp.ne.s32.totalorder %s43, %s45
    %p49 = scmp.eq.s32.totalorder %s14, 0
    %p50 = por %p48, %p49
    %p51 = scmp.ne.s32.totalorder %s43, %s45
    %p52 = scmp.eq.s32.totalorder %s19, 1
    %p53 = por %p51, %p52
    %p54 = scmp.ne.s32.totalorder %s45, %s46
    %p55 = scmp.eq.s32.totalorder %s19, 0
    %p56 = por %p54, %p55
    %p57 = scmp.ne.s32.totalorder %s45, %s46
    %p58 = scmp.eq.s32.totalorder %s20, 1
    %p59 = por %p57, %p58
    %p61 = scmp.ne.s32.totalorder %s46, %s60
    %p62 = scmp.eq.s32.totalorder %s20, 0
    %p63 = por %p61, %p62
    %s65 = sadd.s32 %s64, 1
    %p68 = scmp.eq.s32.totalorder %s14, 1
    %p69 = scmp.ne.s32.totalorder %s64, %s66
    %p70 = scmp.eq.s32.totalorder %s14, 0
    %p71 = por %p69, %p70
    %p72 = scmp.ne.s32.totalorder %s64, %s66
    %p73 = scmp.eq.s32.totalorder %s19, 1
    %p74 = por %p72, %p73
    %p75 = scmp.ne.s32.totalorder %s66, %s67
    %p76 = scmp.eq.s32.totalorder %s19, 0
    %p77 = por %p75, %p76
    %p78 = scmp.ne.s32.totalorder %s66, %s67
    %p79 = scmp.eq.s32.totalorder %s20, 1
    %p80 = por %p78, %p79
    %p82 = scmp.ne.s32.totalorder %s67, %s81
    %p83 = scmp.eq.s32.totalorder %s20, 0
    %p84 = por %p82, %p83
    %s86 = sadd.s32 %s85, 1
    %p89 = scmp.eq.s32.totalorder %s14, 1
    %p90 = scmp.ne.s32.totalorder %s85, %s87
    %p91 = scmp.eq.s32.totalorder %s14, 0
    %p92 = por %p90, %p91
    %p93 = scmp.ne.s32.totalorder %s85, %s87
    %p94 = scmp.eq.s32.totalorder %s19, 1
    %p95 = por %p93, %p94
    %p96 = scmp.ne.s32.totalorder %s87, %s88
    %p97 = scmp.eq.s32.totalorder %s19, 0
    %p98 = por %p96, %p97
    %p99 = scmp.ne.s32.totalorder %s87, %s88
    %p100 = scmp.eq.s32.totalorder %s20, 1
    %p101 = por %p99, %p100
    %p103 = scmp.ne.s32.totalorder %s88, %s102
    %p104 = scmp.eq.s32.totalorder %s20, 0
    %p105 = por %p103, %p104
    %s106 = ssub.s32 %s14, %s21
    %p107 = scmp.eq.s32.totalorder %s106, 0
    %s109 = sadd.s32 %s108, 1
    %s110 = scalar_select %p107, %s108, %s109
    %p113 = pneg %p107
    %p114 = scmp.eq.s32.totalorder %s14, 1
    %p115 = por %p113, %p114
    %p116 = scmp.ne.s32.totalorder %s108, %s111
    %p117 = scmp.eq.s32.totalorder %s14, 0
    %p118 = por %p116, %p117
    %p119 = scmp.ne.s32.totalorder %s108, %s111
    %p120 = scmp.eq.s32.totalorder %s19, 1
    %p121 = por %p119, %p120
    %p122 = scmp.ne.s32.totalorder %s111, %s112
    %p123 = scmp.eq.s32.totalorder %s19, 0
    %p124 = por %p122, %p123
    %p125 = scmp.ne.s32.totalorder %s111, %s112
    %p126 = scmp.eq.s32.totalorder %s20, 1
    %p127 = por %p125, %p126
    %p129 = scmp.ne.s32.totalorder %s112, %s128
    %p130 = scmp.eq.s32.totalorder %s20, 0
    %p131 = por %p129, %p130
    %s132 = ssub.s32 %s14, %s21
    %p133 = scmp.eq.s32.totalorder %s132, 0
    %s135 = sadd.s32 %s134, 1
    %s136 = scalar_select %p133, %s134, %s135
    %p139 = pneg %p133
    %p140 = scmp.eq.s32.totalorder %s14, 1
    %p141 = por %p139, %p140
    %p142 = scmp.ne.s32.totalorder %s134, %s137
    %p143 = scmp.eq.s32.totalorder %s14, 0
    %p144 = por %p142, %p143
    %p145 = scmp.ne.s32.totalorder %s134, %s137
    %p146 = scmp.eq.s32.totalorder %s19, 1
    %p147 = por %p145, %p146
    %p148 = scmp.ne.s32.totalorder %s137, %s138
    %p149 = scmp.eq.s32.totalorder %s19, 0
    %p150 = por %p148, %p149
    %p151 = scmp.ne.s32.totalorder %s137, %s138
    %p152 = scmp.eq.s32.totalorder %s20, 1
    %p153 = por %p151, %p152
    %p155 = scmp.ne.s32.totalorder %s138, %s154
    %p156 = scmp.eq.s32.totalorder %s20, 0
    %p157 = por %p155, %p156
    %s158 = ssub.s32 %s14, %s21
    %p159 = scmp.eq.s32.totalorder %s158, 0
    %s161 = sadd.s32 %s160, 1
    %s162 = scalar_select %p159, %s160, %s161
    %p165 = pneg %p159
    %p166 = scmp.eq.s32.totalorder %s14, 1
    %p167 = por %p165, %p166
    %p168 = scmp.ne.s32.totalorder %s160, %s163
    %p169 = scmp.eq.s32.totalorder %s14, 0
    %p170 = por %p168, %p169
    %p171 = scmp.ne.s32.totalorder %s160, %s163
    %p172 = scmp.eq.s32.totalorder %s19, 1
    %p173 = por %p171, %p172
    %p174 = scmp.ne.s32.totalorder %s163, %s164
    %p175 = scmp.eq.s32.totalorder %s19, 0
    %p176 = por %p174, %p175
    %p177 = scmp.ne.s32.totalorder %s163, %s164
    %p178 = scmp.eq.s32.totalorder %s20, 1
    %p179 = por %p177, %p178
    %p181 = scmp.ne.s32.totalorder %s164, %s180
    %p182 = scmp.eq.s32.totalorder %s20, 0
    %p183 = por %p181, %p182
    %s184 = ssub.s32 %s14, %s21
    %p185 = scmp.eq.s32.totalorder %s184, 0
    %s187 = sadd.s32 %s186, 1
    %s188 = scalar_select %p185, %s186, %s187
    %p191 = pneg %p185
    %p192 = scmp.eq.s32.totalorder %s14, 1
    %p193 = por %p191, %p192
    %p194 = scmp.ne.s32.totalorder %s186, %s189
    %p195 = scmp.eq.s32.totalorder %s14, 0
    %p196 = por %p194, %p195
    %p197 = scmp.ne.s32.totalorder %s186, %s189
    %p198 = scmp.eq.s32.totalorder %s19, 1
    %p199 = por %p197, %p198
    %p200 = scmp.ne.s32.totalorder %s189, %s190
    %p201 = scmp.eq.s32.totalorder %s19, 0
    %p202 = por %p200, %p201
    %p203 = scmp.ne.s32.totalorder %s189, %s190
    %p204 = scmp.eq.s32.totalorder %s20, 1
    %p205 = por %p203, %p204
    %p207 = scmp.ne.s32.totalorder %s190, %s206
    %p208 = scmp.eq.s32.totalorder %s20, 0
    %p209 = por %p207, %p208
    %s210 = ssub.s32 %s14, %s21
    %p211 = scmp.eq.s32.totalorder %s210, 0
    %s213 = sadd.s32 %s212, 1
    %s214 = scalar_select %p211, %s212, %s213
    %p217 = pneg %p211
    %p218 = scmp.eq.s32.totalorder %s14, 1
    %p219 = por %p217, %p218
    %p220 = scmp.ne.s32.totalorder %s212, %s215
    %p221 = scmp.eq.s32.totalorder %s14, 0
    %p222 = por %p220, %p221
    %p223 = scmp.ne.s32.totalorder %s212, %s215
    %p224 = scmp.eq.s32.totalorder %s19, 1
    %p225 = por %p223, %p224
    %p226 = scmp.ne.s32.totalorder %s215, %s216
    %p227 = scmp.eq.s32.totalorder %s19, 0
    %p228 = por %p226, %p227
    %p229 = scmp.ne.s32.totalorder %s215, %s216
    %p230 = scmp.eq.s32.totalorder %s20, 1
    %p231 = por %p229, %p230
    %p233 = scmp.ne.s32.totalorder %s216, %s232
    %p234 = scmp.eq.s32.totalorder %s20, 0
    %p235 = por %p233, %p234
    %p236 = scmp.le.s32.totalorder 1, %s14
    %p237 = scmp.lt.s32.totalorder %s14, 3
    %p238 = pnand %p236, %p237
    %p239 = pneg %p238
    // Predicated region
    $region9: #{diffusion_trainer_forward.1} parent=5 // pred_check
      _
    $region10: #{diffusion_trainer_forward.1} parent=5 // pred_check_branch
      %241 = sbr.rel (%p238) target = $region12
    $region11: #{diffusion_trainer_forward.1} parent=5 // pred_region
      %s242 = ssub.s32 %s14, 1
      // Predicated region
      $region13: #{diffusion_trainer_forward.1} parent=11 // pred_check
        %p243 = pneg %p35
      $region14: #{diffusion_trainer_forward.1} parent=11 // pred_check_branch
        %245 = sbr.rel (%p243) target = $region16
      $region15: #{diffusion_trainer_forward.1} parent=11 // pred_region
        _
      $region16: #{diffusion_trainer_forward.1} parent=11 // pred_fallthru
        _
      // Predicated region
      $region17: #{diffusion_trainer_forward.1} parent=11 // pred_check
        %p246 = pneg %p56
      $region18: #{diffusion_trainer_forward.1} parent=11 // pred_check_branch
        %248 = sbr.rel (%p246) target = $region20
      $region19: #{diffusion_trainer_forward.1} parent=11 // pred_region
        _
      $region20: #{diffusion_trainer_forward.1} parent=11 // pred_fallthru
        _
      // Predicated region
      $region21: #{diffusion_trainer_forward.1} parent=11 // pred_check
        %p249 = pneg %p77
      $region22: #{diffusion_trainer_forward.1} parent=11 // pred_check_branch
        %251 = sbr.rel (%p249) target = $region24
      $region23: #{diffusion_trainer_forward.1} parent=11 // pred_region
        _
      $region24: #{diffusion_trainer_forward.1} parent=11 // pred_fallthru
        _
      // Predicated region
      $region25: #{diffusion_trainer_forward.1} parent=11 // pred_check
        %p252 = pneg %p98
      $region26: #{diffusion_trainer_forward.1} parent=11 // pred_check_branch
        %254 = sbr.rel (%p252) target = $region28
      $region27: #{diffusion_trainer_forward.1} parent=11 // pred_region
        _
      $region28: #{diffusion_trainer_forward.1} parent=11 // pred_fallthru
        _
    $region12: #{diffusion_trainer_forward.1} parent=5 // pred_fallthru
      _
    %p255 = scmp.lt.s32.totalorder %s14, 2
    // Predicated region
    $region29: #{diffusion_trainer_forward.1} parent=5 // pred_check
      %p256 = pneg %p255
    $region30: #{diffusion_trainer_forward.1} parent=5 // pred_check_branch
      %258 = sbr.rel (%p256) target = $region32
    $region31: #{diffusion_trainer_forward.1} parent=5 // pred_region
      // Predicated region
      $region33: #{diffusion_trainer_forward.1} parent=31 // pred_check
        %p259 = pneg %p118
      $region34: #{diffusion_trainer_forward.1} parent=31 // pred_check_branch
        %261 = sbr.rel (%p259) target = $region36
      $region35: #{diffusion_trainer_forward.1} parent=31 // pred_region
        %s262 = smul.u32 2, %s14
        %p263 = scmp.lt.s32.totalorder %s262, 3
        %s264 = scalar_select %p263, %s262, 3
        %s265 = scalar_lea.vmem %s4, %s264
        %s266 = smul.u32 2, %s14
      $region36: #{diffusion_trainer_forward.1} parent=31 // pred_fallthru
        _
      // Predicated region
      $region37: #{diffusion_trainer_forward.1} parent=31 // pred_check
        %p267 = pneg %p144
      $region38: #{diffusion_trainer_forward.1} parent=31 // pred_check_branch
        %269 = sbr.rel (%p267) target = $region40
      $region39: #{diffusion_trainer_forward.1} parent=31 // pred_region
        %s270 = smul.u32 2, %s14
        %p271 = scmp.lt.s32.totalorder %s270, 3
        %s272 = scalar_select %p271, %s270, 3
        %s273 = scalar_lea.vmem %s5, %s272
        %s274 = smul.u32 2, %s14
      $region40: #{diffusion_trainer_forward.1} parent=31 // pred_fallthru
        _
      // Predicated region
      $region41: #{diffusion_trainer_forward.1} parent=31 // pred_check
        %p275 = pneg %p170
      $region42: #{diffusion_trainer_forward.1} parent=31 // pred_check_branch
        %277 = sbr.rel (%p275) target = $region44
      $region43: #{diffusion_trainer_forward.1} parent=31 // pred_region
        %s278 = smul.u32 2, %s14
        %p279 = scmp.lt.s32.totalorder %s278, 3
        %s280 = scalar_select %p279, %s278, 3
        %s281 = scalar_lea.vmem %s6, %s280
        %s282 = smul.u32 2, %s14
      $region44: #{diffusion_trainer_forward.1} parent=31 // pred_fallthru
        _
      // Predicated region
      $region45: #{diffusion_trainer_forward.1} parent=31 // pred_check
        %p283 = pneg %p196
      $region46: #{diffusion_trainer_forward.1} parent=31 // pred_check_branch
        %285 = sbr.rel (%p283) target = $region48
      $region47: #{diffusion_trainer_forward.1} parent=31 // pred_region
        %s286 = smul.u32 2, %s14
        %p287 = scmp.lt.s32.totalorder %s286, 3
        %s288 = scalar_select %p287, %s286, 3
        %s289 = scalar_lea.vmem %s7, %s288
        %s290 = smul.u32 2, %s14
      $region48: #{diffusion_trainer_forward.1} parent=31 // pred_fallthru
        _
    $region32: #{diffusion_trainer_forward.1} parent=5 // pred_fallthru
      _
    %p291 = scmp.le.s32.totalorder 1, %s14
    %p292 = scmp.lt.s32.totalorder %s14, 3
    %p293 = pnand %p291, %p292
    %p294 = pneg %p293
    // Predicated region
    $region49: #{diffusion_trainer_forward.1} parent=5 // pred_check
      _
    $region50: #{diffusion_trainer_forward.1} parent=5 // pred_check_branch
      %296 = sbr.rel (%p293) target = $region52
    $region51: #{diffusion_trainer_forward.1} parent=5 // pred_region
      %s297 = ssub.s32 %s14, 1
      %p298 = pneg %p35
      %p299 = pneg %p32
      %p300 = pneg %p56
      %p301 = pneg %p53
      %p302 = pneg %p77
      %p303 = pneg %p74
      %p304 = pneg %p98
      %p305 = pneg %p95
      %s306 = smul.u32 2, %s19
      %p307 = scmp.lt.s32.totalorder %s306, 3
      %s308 = scalar_select %p307, %s306, 3
      %s309 = scalar_lea.vmem %s4, %s308
      %p310 = pneg %p124
      %p311 = pneg %p121
      %s312 = smul.u32 2, %s19
      %p313 = scmp.lt.s32.totalorder %s312, 3
      %s314 = scalar_select %p313, %s312, 3
      %s315 = scalar_lea.vmem %s5, %s314
      %p316 = pneg %p150
      %p317 = pneg %p147
      %s318 = smul.u32 2, %s19
      %p319 = scmp.lt.s32.totalorder %s318, 3
      %s320 = scalar_select %p319, %s318, 3
      %s321 = scalar_lea.vmem %s6, %s320
      %p322 = pneg %p176
      %p323 = pneg %p173
      %s324 = smul.u32 2, %s19
      %p325 = scmp.lt.s32.totalorder %s324, 3
      %s326 = scalar_select %p325, %s324, 3
      %s327 = scalar_lea.vmem %s7, %s326
      %p328 = pneg %p202
      %p329 = pneg %p199
      %p330 = pneg %p228
      %p331 = pneg %p225
      %s332 = smul.u32 2, %s19
      %p333 = scmp.lt.s32.totalorder %s332, 3
      %s334 = scalar_select %p333, %s332, 3
      %s335 = scalar_lea.vmem %s8, %s334
      %s336 = smul.u32 2, %s19
      %p337 = scmp.lt.s32.totalorder %s336, 3
      %s338 = scalar_select %p337, %s336, 3
      %s339 = scalar_lea.vmem %s4, %s338
      %s340 = smul.u32 2, %s19
      %s341 = smul.u32 2, %s19
      %p342 = scmp.lt.s32.totalorder %s341, 3
      %s343 = scalar_select %p342, %s341, 3
      %s344 = scalar_lea.vmem %s5, %s343
      %s345 = smul.u32 2, %s19
      %s346 = smul.u32 2, %s19
      %p347 = scmp.lt.s32.totalorder %s346, 3
      %s348 = scalar_select %p347, %s346, 3
      %s349 = scalar_lea.vmem %s6, %s348
      %s350 = smul.u32 2, %s19
      %s351 = smul.u32 2, %s19
      %p352 = scmp.lt.s32.totalorder %s351, 3
      %s353 = scalar_select %p352, %s351, 3
      %s354 = scalar_lea.vmem %s7, %s353
      %s355 = smul.u32 2, %s19
      %s356 = smul.u32 2, %s19
      %p357 = scmp.lt.s32.totalorder %s356, 3
      %s358 = scalar_select %p357, %s356, 3
      %s359 = scalar_lea.vmem %s8, %s358
      %s360 = smul.u32 2, %s19
      %v366 = vlaneseq
      %v367 = vshrl.u32 %v366, 7
      %v368 = vadd.s32 %v367, 8
      %v369 = vadd.s32 %v367, 16
      %v370 = vadd.s32 %v367, 24
      %v371 = vadd.s32 %v367, 32
      %v372 = vadd.s32 %v367, 40
      %v373 = vadd.s32 %v367, 48
      %v374 = vadd.s32 %v367, 56
      %v375 = vadd.s32 %v367, 64
      %v376 = vadd.s32 %v367, 72
      %v377 = vadd.s32 %v367, 80
      %v378 = vadd.s32 %v367, 88
      %v379 = vadd.s32 %v367, 96
      %v380 = vadd.s32 %v367, 104
      %v381 = vadd.s32 %v367, 112
      %v382 = vadd.s32 %v367, 120
      %v383 = vld [vmem:[%s339] sm:$0x3]
      %v384 = vlaneseq
      %v385 = vshrl.u32 %v384, 7
      %v386 = vsub.s32 0, %v385
      %v387 = vrot.slane %v383, %v386
      %v388 = vlaneseq
      %v389 = vshrl.u32 %v388, 7
      %v390 = vsub.s32 1, %v389
      %v391 = vrot.slane %v383, %v390
      %vm392 = vcmp.eq.s32.totalorder %v367, %v387
      %vm393 = vcmp.eq.s32.totalorder %v367, %v391
      %vm394 = vcmp.eq.s32.totalorder %v368, %v387
      %vm395 = vcmp.eq.s32.totalorder %v368, %v391
      %vm396 = vcmp.eq.s32.totalorder %v369, %v387
      %vm397 = vcmp.eq.s32.totalorder %v369, %v391
      %vm398 = vcmp.eq.s32.totalorder %v370, %v387
      %vm399 = vcmp.eq.s32.totalorder %v370, %v391
      %vm400 = vcmp.eq.s32.totalorder %v371, %v387
      %vm401 = vcmp.eq.s32.totalorder %v371, %v391
      %vm402 = vcmp.eq.s32.totalorder %v372, %v387
      %vm403 = vcmp.eq.s32.totalorder %v372, %v391
      %vm404 = vcmp.eq.s32.totalorder %v373, %v387
      %vm405 = vcmp.eq.s32.totalorder %v373, %v391
      %vm406 = vcmp.eq.s32.totalorder %v374, %v387
      %vm407 = vcmp.eq.s32.totalorder %v374, %v391
      %vm408 = vcmp.eq.s32.totalorder %v375, %v387
      %vm409 = vcmp.eq.s32.totalorder %v375, %v391
      %vm410 = vcmp.eq.s32.totalorder %v376, %v387
      %vm411 = vcmp.eq.s32.totalorder %v376, %v391
      %vm412 = vcmp.eq.s32.totalorder %v377, %v387
      %vm413 = vcmp.eq.s32.totalorder %v377, %v391
      %vm414 = vcmp.eq.s32.totalorder %v378, %v387
      %vm415 = vcmp.eq.s32.totalorder %v378, %v391
      %vm416 = vcmp.eq.s32.totalorder %v379, %v387
      %vm417 = vcmp.eq.s32.totalorder %v379, %v391
      %vm418 = vcmp.eq.s32.totalorder %v380, %v387
      %vm419 = vcmp.eq.s32.totalorder %v380, %v391
      %vm420 = vcmp.eq.s32.totalorder %v381, %v387
      %vm421 = vcmp.eq.s32.totalorder %v381, %v391
      %vm422 = vcmp.eq.s32.totalorder %v382, %v387
      %vm423 = vcmp.eq.s32.totalorder %v382, %v391
      %v424 = vsel %vm392, 1, 0
      %v425 = vsel %vm393, 1, 0
      %v426 = vsel %vm394, 1, 0
      %v427 = vsel %vm395, 1, 0
      %v428 = vsel %vm396, 1, 0
      %v429 = vsel %vm397, 1, 0
      %v430 = vsel %vm398, 1, 0
      %v431 = vsel %vm399, 1, 0
      %v432 = vsel %vm400, 1, 0
      %v433 = vsel %vm401, 1, 0
      %v434 = vsel %vm402, 1, 0
      %v435 = vsel %vm403, 1, 0
      %v436 = vsel %vm404, 1, 0
      %v437 = vsel %vm405, 1, 0
      %v438 = vsel %vm406, 1, 0
      %v439 = vsel %vm407, 1, 0
      %v440 = vsel %vm408, 1, 0
      %v441 = vsel %vm409, 1, 0
      %v442 = vsel %vm410, 1, 0
      %v443 = vsel %vm411, 1, 0
      %v444 = vsel %vm412, 1, 0
      %v445 = vsel %vm413, 1, 0
      %v446 = vsel %vm414, 1, 0
      %v447 = vsel %vm415, 1, 0
      %v448 = vsel %vm416, 1, 0
      %v449 = vsel %vm417, 1, 0
      %v450 = vsel %vm418, 1, 0
      %v451 = vsel %vm419, 1, 0
      %v452 = vsel %vm420, 1, 0
      %v453 = vsel %vm421, 1, 0
      %v454 = vsel %vm422, 1, 0
      %v455 = vsel %vm423, 1, 0
      %v456 = vcvt.s32.f32 %v424
      %v457 = vcvt.s32.f32 %v425
      %v458 = vcvt.s32.f32 %v426
      %v459 = vcvt.s32.f32 %v427
      %v460 = vcvt.s32.f32 %v428
      %v461 = vcvt.s32.f32 %v429
      %v462 = vcvt.s32.f32 %v430
      %v463 = vcvt.s32.f32 %v431
      %v464 = vcvt.s32.f32 %v432
      %v465 = vcvt.s32.f32 %v433
      %v466 = vcvt.s32.f32 %v434
      %v467 = vcvt.s32.f32 %v435
      %v468 = vcvt.s32.f32 %v436
      %v469 = vcvt.s32.f32 %v437
      %v470 = vcvt.s32.f32 %v438
      %v471 = vcvt.s32.f32 %v439
      %v472 = vcvt.s32.f32 %v440
      %v473 = vcvt.s32.f32 %v441
      %v474 = vcvt.s32.f32 %v442
      %v475 = vcvt.s32.f32 %v443
      %v476 = vcvt.s32.f32 %v444
      %v477 = vcvt.s32.f32 %v445
      %v478 = vcvt.s32.f32 %v446
      %v479 = vcvt.s32.f32 %v447
      %v480 = vcvt.s32.f32 %v448
      %v481 = vcvt.s32.f32 %v449
      %v482 = vcvt.s32.f32 %v450
      %v483 = vcvt.s32.f32 %v451
      %v484 = vcvt.s32.f32 %v452
      %v485 = vcvt.s32.f32 %v453
      %v486 = vcvt.s32.f32 %v454
      %v487 = vcvt.s32.f32 %v455
      %v488 = vpack.c.bf16 %v458, %v456
      %v489 = vpack.c.bf16 %v459, %v457
      %v490 = vpack.c.bf16 %v462, %v460
      %v491 = vpack.c.bf16 %v463, %v461
      %v492 = vpack.c.bf16 %v466, %v464
      %v493 = vpack.c.bf16 %v467, %v465
      %v494 = vpack.c.bf16 %v470, %v468
      %v495 = vpack.c.bf16 %v471, %v469
      %v496 = vpack.c.bf16 %v474, %v472
      %v497 = vpack.c.bf16 %v475, %v473
      %v498 = vpack.c.bf16 %v478, %v476
      %v499 = vpack.c.bf16 %v479, %v477
      %v500 = vpack.c.bf16 %v482, %v480
      %v501 = vpack.c.bf16 %v483, %v481
      %v502 = vpack.c.bf16 %v486, %v484
      %v503 = vpack.c.bf16 %v487, %v485
      %v504 = vld [vmem:[%s0] sm:$0xf]
      %v505 = vld [vmem:[%s0 + $0x4] sm:$0xf]
      %v506 = vld [vmem:[%s0 + $0x8] sm:$0xf]
      %v507 = vld [vmem:[%s0 + $0xc] sm:$0xf]
      %v508 = vld [vmem:[%s0 + $0x10] sm:$0xf]
      %v509 = vld [vmem:[%s0 + $0x14] sm:$0xf]
      %v510 = vld [vmem:[%s0 + $0x18] sm:$0xf]
      %v511 = vld [vmem:[%s0 + $0x1c] sm:$0xf]
      %v512 = vld [vmem:[%s0 + $0x20] sm:$0xf]
      %v513 = vld [vmem:[%s0 + $0x24] sm:$0xf]
      %v514 = vld [vmem:[%s0 + $0x28] sm:$0xf]
      %v515 = vld [vmem:[%s0 + $0x2c] sm:$0xf]
      %v516 = vld [vmem:[%s0 + $0x30] sm:$0xf]
      %v517 = vld [vmem:[%s0 + $0x34] sm:$0xf]
      %v518 = vld [vmem:[%s0 + $0x38] sm:$0xf]
      %v519 = vld [vmem:[%s0 + $0x3c] sm:$0xf]
      %v520 = vld [vmem:[%s1] sm:$0xff]
      %v521 = vld [vmem:[%s1 + $0x8] sm:$0xff]
      %v522 = vld [vmem:[%s1 + $0x10] sm:$0xff]
      %v523 = vld [vmem:[%s1 + $0x18] sm:$0xff]
      %v524 = vld [vmem:[%s1 + $0x20] sm:$0xff]
      %v525 = vld [vmem:[%s1 + $0x28] sm:$0xff]
      %v526 = vld [vmem:[%s1 + $0x30] sm:$0xff]
      %v527 = vld [vmem:[%s1 + $0x38] sm:$0xff]
      %v528 = vld [vmem:[%s1 + $0x40] sm:$0xff]
      %v529 = vld [vmem:[%s1 + $0x48] sm:$0xff]
      %v530 = vld [vmem:[%s1 + $0x50] sm:$0xff]
      %v531 = vld [vmem:[%s1 + $0x58] sm:$0xff]
      %v532 = vld [vmem:[%s1 + $0x60] sm:$0xff]
      %v533 = vld [vmem:[%s1 + $0x68] sm:$0xff]
      %v534 = vld [vmem:[%s1 + $0x70] sm:$0xff]
      %v535 = vld [vmem:[%s1 + $0x78] sm:$0xff]
      %v536 = vld [vmem:[%s344] sm:$0x3]
      %538 = vset.pattern.permute.xlu0 0
      %539 = vperm.xlu0 %538, %v520
      %v540 = vpop.permute.xlu0 %539
      %543 = vset.pattern.permute.xlu0 0
      %544 = vperm.xlu0 %543, %v521
      %v545 = vpop.permute.xlu0 %544
      %548 = vset.pattern.permute.xlu0 0
      %549 = vperm.xlu0 %548, %v522
      %v550 = vpop.permute.xlu0 %549
      %553 = vset.pattern.permute.xlu0 0
      %554 = vperm.xlu0 %553, %v523
      %v555 = vpop.permute.xlu0 %554
      %558 = vset.pattern.permute.xlu0 0
      %559 = vperm.xlu0 %558, %v524
      %v560 = vpop.permute.xlu0 %559
      %563 = vset.pattern.permute.xlu0 0
      %564 = vperm.xlu0 %563, %v525
      %v565 = vpop.permute.xlu0 %564
      %568 = vset.pattern.permute.xlu0 0
      %569 = vperm.xlu0 %568, %v526
      %v570 = vpop.permute.xlu0 %569
      %573 = vset.pattern.permute.xlu0 0
      %574 = vperm.xlu0 %573, %v527
      %v575 = vpop.permute.xlu0 %574
      %578 = vset.pattern.permute.xlu0 0
      %579 = vperm.xlu0 %578, %v528
      %v580 = vpop.permute.xlu0 %579
      %583 = vset.pattern.permute.xlu0 0
      %584 = vperm.xlu0 %583, %v529
      %v585 = vpop.permute.xlu0 %584
      %588 = vset.pattern.permute.xlu0 0
      %589 = vperm.xlu0 %588, %v530
      %v590 = vpop.permute.xlu0 %589
      %593 = vset.pattern.permute.xlu0 0
      %594 = vperm.xlu0 %593, %v531
      %v595 = vpop.permute.xlu0 %594
      %598 = vset.pattern.permute.xlu0 0
      %599 = vperm.xlu0 %598, %v532
      %v600 = vpop.permute.xlu0 %599
      %603 = vset.pattern.permute.xlu0 0
      %604 = vperm.xlu0 %603, %v533
      %v605 = vpop.permute.xlu0 %604
      %608 = vset.pattern.permute.xlu0 0
      %609 = vperm.xlu0 %608, %v534
      %v610 = vpop.permute.xlu0 %609
      %613 = vset.pattern.permute.xlu0 0
      %614 = vperm.xlu0 %613, %v535
      %v615 = vpop.permute.xlu0 %614
      %v618 = vlaneseq
      %v619 = vshrl.u32 %v618, 7
      %v620 = vsub.s32 0, %v619
      %v621 = vrot.slane %v536, %v620
      %v622 = vlaneseq
      %v623 = vshrl.u32 %v622, 7
      %v624 = vsub.s32 1, %v623
      %v625 = vrot.slane %v536, %v624
      %v628 = vmul.f32 %v540, %v621
      %v629 = vmul.f32 %v540, %v625
      %v630 = vmul.f32 %v545, %v621
      %v631 = vmul.f32 %v545, %v625
      %v632 = vmul.f32 %v550, %v621
      %v633 = vmul.f32 %v550, %v625
      %v634 = vmul.f32 %v555, %v621
      %v635 = vmul.f32 %v555, %v625
      %v636 = vmul.f32 %v560, %v621
      %v637 = vmul.f32 %v560, %v625
      %v638 = vmul.f32 %v565, %v621
      %v639 = vmul.f32 %v565, %v625
      %v640 = vmul.f32 %v570, %v621
      %v641 = vmul.f32 %v570, %v625
      %v642 = vmul.f32 %v575, %v621
      %v643 = vmul.f32 %v575, %v625
      %v644 = vmul.f32 %v580, %v621
      %v645 = vmul.f32 %v580, %v625
      %v646 = vmul.f32 %v585, %v621
      %v647 = vmul.f32 %v585, %v625
      %v648 = vmul.f32 %v590, %v621
      %v649 = vmul.f32 %v590, %v625
      %v650 = vmul.f32 %v595, %v621
      %v651 = vmul.f32 %v595, %v625
      %v652 = vmul.f32 %v600, %v621
      %v653 = vmul.f32 %v600, %v625
      %v654 = vmul.f32 %v605, %v621
      %v655 = vmul.f32 %v605, %v625
      %v656 = vmul.f32 %v610, %v621
      %v657 = vmul.f32 %v610, %v625
      %v658 = vmul.f32 %v615, %v621
      %v659 = vmul.f32 %v615, %v625
      %v676 = vunpack.c.l.b16 %v504
      %v677 = vunpack.c.l.b16 %v505
      %v678 = vunpack.c.l.b16 %v506
      %v679 = vunpack.c.l.b16 %v507
      %v680 = vunpack.c.l.b16 %v508
      %v681 = vunpack.c.l.b16 %v509
      %v682 = vunpack.c.l.b16 %v510
      %v683 = vunpack.c.l.b16 %v511
      %v684 = vunpack.c.l.b16 %v512
      %v685 = vunpack.c.l.b16 %v513
      %v686 = vunpack.c.l.b16 %v514
      %v687 = vunpack.c.l.b16 %v515
      %v688 = vunpack.c.l.b16 %v516
      %v689 = vunpack.c.l.b16 %v517
      %v690 = vunpack.c.l.b16 %v518
      %v691 = vunpack.c.l.b16 %v519
      %v692 = vpack.c.b16 %v677, %v676
      %v693 = vpack.c.b16 %v679, %v678
      %v694 = vpack.c.b16 %v681, %v680
      %v695 = vpack.c.b16 %v683, %v682
      %v696 = vpack.c.b16 %v685, %v684
      %v697 = vpack.c.b16 %v687, %v686
      %v698 = vpack.c.b16 %v689, %v688
      %v699 = vpack.c.b16 %v691, %v690
      %708 = vmatprep.subr.bf16.mxu0 %v489
      %709 = vmatpush1.bf16.msra.mxu0 %v488
      %710 = vmatprep.subr.bf16.mxu0 %v491
      %711 = vmatpush1.bf16.msra.mxu0 %v490
      %712 = vmatprep.subr.bf16.mxu0 %v493
      %713 = vmatpush1.bf16.msra.mxu0 %v492
      %714 = vmatprep.subr.bf16.mxu0 %v495
      %715 = vmatpush1.bf16.msra.mxu0 %v494
      %716 = vmatprep.subr.bf16.mxu0 %v497
      %717 = vmatpush1.bf16.msra.mxu0 %v496
      %718 = vmatprep.subr.bf16.mxu0 %v499
      %719 = vmatpush1.bf16.msra.mxu0 %v498
      %720 = vmatprep.subr.bf16.mxu0 %v501
      %721 = vmatpush1.bf16.msra.mxu0 %v500
      %722 = vmatprep.subr.bf16.mxu0 %v503
      %723 = vmatpush1.bf16.msra.mxu0 %v502
      %724 = vmatprep.subr.bf16.mxu0 0
      %725 = vmatpush1.bf16.msra.mxu0 0
      %726 = vmatprep.subr.bf16.mxu0 0
      %727 = vmatpush1.bf16.msra.mxu0 0
      %728 = vmatprep.subr.bf16.mxu0 0
      %729 = vmatpush1.bf16.msra.mxu0 0
      %730 = vmatprep.subr.bf16.mxu0 0
      %731 = vmatpush1.bf16.msra.mxu0 0
      %732 = vmatprep.subr.bf16.mxu0 0
      %733 = vmatpush1.bf16.msra.mxu0 0
      %734 = vmatprep.subr.bf16.mxu0 0
      %735 = vmatpush1.bf16.msra.mxu0 0
      %736 = vmatprep.subr.bf16.mxu0 0
      %737 = vmatpush1.bf16.msra.mxu0 0
      %738 = vmatprep.subr.bf16.mxu0 0
      %739 = vmatpush1.bf16.msra.mxu0 0
      %740 = vmatprep.mubr.bf16.mxu0 0
      %741 = vmatmul.mubr.bf16.gmra.mrb[0].mxu0 %v692
      %v742 = vpop.f32.mrb[0].mxu0
      %v743 = vadd.f32 %v628, %v742
      %v744 = vpop.f32.mrb[0].mxu0
      %v745 = vadd.f32 %v629, %v744
      %v746 = vpop.f32.mrb[0].mxu0
      %v747 = vadd.f32 %v630, %v746
      %v748 = vpop.f32.mrb[0].mxu0
      %v749 = vadd.f32 %v631, %v748
      %750 = vmatprep.mubr.bf16.mxu0 0
      %751 = vmatmul.mubr.bf16.gmra.mrb[0].mxu0 %v693
      %v752 = vpop.f32.mrb[0].mxu0
      %v753 = vadd.f32 %v632, %v752
      %v754 = vpop.f32.mrb[0].mxu0
      %v755 = vadd.f32 %v633, %v754
      %v756 = vpop.f32.mrb[0].mxu0
      %v757 = vadd.f32 %v634, %v756
      %v758 = vpop.f32.mrb[0].mxu0
      %v759 = vadd.f32 %v635, %v758
      %760 = vmatprep.mubr.bf16.mxu0 0
      %761 = vmatmul.mubr.bf16.gmra.mrb[0].mxu0 %v694
      %v762 = vpop.f32.mrb[0].mxu0
      %v763 = vadd.f32 %v636, %v762
      %v764 = vpop.f32.mrb[0].mxu0
      %v765 = vadd.f32 %v637, %v764
      %v766 = vpop.f32.mrb[0].mxu0
      %v767 = vadd.f32 %v638, %v766
      %v768 = vpop.f32.mrb[0].mxu0
      %v769 = vadd.f32 %v639, %v768
      %770 = vmatprep.mubr.bf16.mxu0 0
      %771 = vmatmul.mubr.bf16.gmra.mrb[0].mxu0 %v695
      %v772 = vpop.f32.mrb[0].mxu0
      %v773 = vadd.f32 %v640, %v772
      %v774 = vpop.f32.mrb[0].mxu0
      %v775 = vadd.f32 %v641, %v774
      %v776 = vpop.f32.mrb[0].mxu0
      %v777 = vadd.f32 %v642, %v776
      %v778 = vpop.f32.mrb[0].mxu0
      %v779 = vadd.f32 %v643, %v778
      %780 = vmatprep.mubr.bf16.mxu0 0
      %781 = vmatmul.mubr.bf16.gmra.mrb[0].mxu0 %v696
      %v782 = vpop.f32.mrb[0].mxu0
      %v783 = vadd.f32 %v644, %v782
      %v784 = vpop.f32.mrb[0].mxu0
      %v785 = vadd.f32 %v645, %v784
      %v786 = vpop.f32.mrb[0].mxu0
      %v787 = vadd.f32 %v646, %v786
      %v788 = vpop.f32.mrb[0].mxu0
      %v789 = vadd.f32 %v647, %v788
      %790 = vmatprep.mubr.bf16.mxu0 0
      %791 = vmatmul.mubr.bf16.gmra.mrb[0].mxu0 %v697
      %v792 = vpop.f32.mrb[0].mxu0
      %v793 = vadd.f32 %v648, %v792
      %v794 = vpop.f32.mrb[0].mxu0
      %v795 = vadd.f32 %v649, %v794
      %v796 = vpop.f32.mrb[0].mxu0
      %v797 = vadd.f32 %v650, %v796
      %v798 = vpop.f32.mrb[0].mxu0
      %v799 = vadd.f32 %v651, %v798
      %800 = vmatprep.mubr.bf16.mxu0 0
      %801 = vmatmul.mubr.bf16.gmra.mrb[0].mxu0 %v698
      %v802 = vpop.f32.mrb[0].mxu0
      %v803 = vadd.f32 %v652, %v802
      %v804 = vpop.f32.mrb[0].mxu0
      %v805 = vadd.f32 %v653, %v804
      %v806 = vpop.f32.mrb[0].mxu0
      %v807 = vadd.f32 %v654, %v806
      %v808 = vpop.f32.mrb[0].mxu0
      %v809 = vadd.f32 %v655, %v808
      %810 = vmatprep.mubr.bf16.mxu0 0
      %811 = vmatmul.mubr.bf16.gmra.mrb[0].mxu0 %v699
      %v812 = vpop.f32.mrb[0].mxu0
      %v813 = vadd.f32 %v656, %v812
      %v814 = vpop.f32.mrb[0].mxu0
      %v815 = vadd.f32 %v657, %v814
      %v816 = vpop.f32.mrb[0].mxu0
      %v817 = vadd.f32 %v658, %v816
      %v818 = vpop.f32.mrb[0].mxu0
      %v819 = vadd.f32 %v659, %v818
      %820 = vdwg.mxu0
      %v821 = vpack.c.bf16 %v747, %v743
      %v822 = vpack.c.bf16 %v749, %v745
      %v823 = vpack.c.bf16 %v757, %v753
      %v824 = vpack.c.bf16 %v759, %v755
      %v825 = vpack.c.bf16 %v767, %v763
      %v826 = vpack.c.bf16 %v769, %v765
      %v827 = vpack.c.bf16 %v777, %v773
      %v828 = vpack.c.bf16 %v779, %v775
      %v829 = vpack.c.bf16 %v787, %v783
      %v830 = vpack.c.bf16 %v789, %v785
      %v831 = vpack.c.bf16 %v797, %v793
      %v832 = vpack.c.bf16 %v799, %v795
      %v833 = vpack.c.bf16 %v807, %v803
      %v834 = vpack.c.bf16 %v809, %v805
      %v835 = vpack.c.bf16 %v817, %v813
      %v836 = vpack.c.bf16 %v819, %v815
      %v837 = vld [vmem:[%s2] sm:$0xf]
      %v838 = vld [vmem:[%s2 + $0x4] sm:$0xf]
      %v839 = vld [vmem:[%s2 + $0x8] sm:$0xf]
      %v840 = vld [vmem:[%s2 + $0xc] sm:$0xf]
      %v841 = vld [vmem:[%s2 + $0x10] sm:$0xf]
      %v842 = vld [vmem:[%s2 + $0x14] sm:$0xf]
      %v843 = vld [vmem:[%s2 + $0x18] sm:$0xf]
      %v844 = vld [vmem:[%s2 + $0x1c] sm:$0xf]
      %v845 = vld [vmem:[%s2 + $0x20] sm:$0xf]
      %v846 = vld [vmem:[%s2 + $0x24] sm:$0xf]
      %v847 = vld [vmem:[%s2 + $0x28] sm:$0xf]
      %v848 = vld [vmem:[%s2 + $0x2c] sm:$0xf]
      %v849 = vld [vmem:[%s2 + $0x30] sm:$0xf]
      %v850 = vld [vmem:[%s2 + $0x34] sm:$0xf]
      %v851 = vld [vmem:[%s2 + $0x38] sm:$0xf]
      %v852 = vld [vmem:[%s2 + $0x3c] sm:$0xf]
      %v853 = vld [vmem:[%s2 + $0x40] sm:$0xf]
      %v854 = vld [vmem:[%s2 + $0x44] sm:$0xf]
      %v855 = vld [vmem:[%s2 + $0x48] sm:$0xf]
      %v856 = vld [vmem:[%s2 + $0x4c] sm:$0xf]
      %v857 = vld [vmem:[%s2 + $0x50] sm:$0xf]
      %v858 = vld [vmem:[%s2 + $0x54] sm:$0xf]
      %v859 = vld [vmem:[%s2 + $0x58] sm:$0xf]
      %v860 = vld [vmem:[%s2 + $0x5c] sm:$0xf]
      %v861 = vld [vmem:[%s2 + $0x60] sm:$0xf]
      %v862 = vld [vmem:[%s2 + $0x64] sm:$0xf]
      %v863 = vld [vmem:[%s2 + $0x68] sm:$0xf]
      %v864 = vld [vmem:[%s2 + $0x6c] sm:$0xf]
      %v865 = vld [vmem:[%s2 + $0x70] sm:$0xf]
      %v866 = vld [vmem:[%s2 + $0x74] sm:$0xf]
      %v867 = vld [vmem:[%s2 + $0x78] sm:$0xf]
      %v868 = vld [vmem:[%s2 + $0x7c] sm:$0xf]
      %v901 = vunpack.c.l.b16 %v837
      %v902 = vunpack.c.l.b16 %v838
      %v903 = vunpack.c.l.b16 %v839
      %v904 = vunpack.c.l.b16 %v840
      %v905 = vunpack.c.l.b16 %v841
      %v906 = vunpack.c.l.b16 %v842
      %v907 = vunpack.c.l.b16 %v843
      %v908 = vunpack.c.l.b16 %v844
      %v909 = vunpack.c.l.b16 %v845
      %v910 = vunpack.c.l.b16 %v846
      %v911 = vunpack.c.l.b16 %v847
      %v912 = vunpack.c.l.b16 %v848
      %v913 = vunpack.c.l.b16 %v849
      %v914 = vunpack.c.l.b16 %v850
      %v915 = vunpack.c.l.b16 %v851
      %v916 = vunpack.c.l.b16 %v852
      %v917 = vunpack.c.l.b16 %v853
      %v918 = vunpack.c.l.b16 %v854
      %v919 = vunpack.c.l.b16 %v855
      %v920 = vunpack.c.l.b16 %v856
      %v921 = vunpack.c.l.b16 %v857
      %v922 = vunpack.c.l.b16 %v858
      %v923 = vunpack.c.l.b16 %v859
      %v924 = vunpack.c.l.b16 %v860
      %v925 = vunpack.c.l.b16 %v861
      %v926 = vunpack.c.l.b16 %v862
      %v927 = vunpack.c.l.b16 %v863
      %v928 = vunpack.c.l.b16 %v864
      %v929 = vunpack.c.l.b16 %v865
      %v930 = vunpack.c.l.b16 %v866
      %v931 = vunpack.c.l.b16 %v867
      %v932 = vunpack.c.l.b16 %v868
      %v933 = vpack.c.b16 %v902, %v901
      %v934 = vpack.c.b16 %v904, %v903
      %v935 = vpack.c.b16 %v906, %v905
      %v936 = vpack.c.b16 %v908, %v907
      %v937 = vpack.c.b16 %v910, %v909
      %v938 = vpack.c.b16 %v912, %v911
      %v939 = vpack.c.b16 %v914, %v913
      %v940 = vpack.c.b16 %v916, %v915
      %v941 = vpack.c.b16 %v918, %v917
      %v942 = vpack.c.b16 %v920, %v919
      %v943 = vpack.c.b16 %v922, %v921
      %v944 = vpack.c.b16 %v924, %v923
      %v945 = vpack.c.b16 %v926, %v925
      %v946 = vpack.c.b16 %v928, %v927
      %v947 = vpack.c.b16 %v930, %v929
      %v948 = vpack.c.b16 %v932, %v931
      %965 = vmatprep.subr.bf16.mxu0 %v822
      %966 = vmatpush1.bf16.msra.mxu0 %v821
      %967 = vmatprep.subr.bf16.mxu0 %v824
      %968 = vmatpush1.bf16.msra.mxu0 %v823
      %969 = vmatprep.subr.bf16.mxu0 %v826
      %970 = vmatpush1.bf16.msra.mxu0 %v825
      %971 = vmatprep.subr.bf16.mxu0 %v828
      %972 = vmatpush1.bf16.msra.mxu0 %v827
      %973 = vmatprep.subr.bf16.mxu0 %v830
      %974 = vmatpush1.bf16.msra.mxu0 %v829
      %975 = vmatprep.subr.bf16.mxu0 %v832
      %976 = vmatpush1.bf16.msra.mxu0 %v831
      %977 = vmatprep.subr.bf16.mxu0 %v834
      %978 = vmatpush1.bf16.msra.mxu0 %v833
      %979 = vmatprep.subr.bf16.mxu0 %v836
      %980 = vmatpush1.bf16.msra.mxu0 %v835
      %981 = vmatprep.subr.bf16.mxu0 0
      %982 = vmatpush1.bf16.msra.mxu0 0
      %983 = vmatprep.subr.bf16.mxu0 0
      %984 = vmatpush1.bf16.msra.mxu0 0
      %985 = vmatprep.subr.bf16.mxu0 0
      %986 = vmatpush1.bf16.msra.mxu0 0
      %987 = vmatprep.subr.bf16.mxu0 0
      %988 = vmatpush1.bf16.msra.mxu0 0
      %989 = vmatprep.subr.bf16.mxu0 0
      %990 = vmatpush1.bf16.msra.mxu0 0
      %991 = vmatprep.subr.bf16.mxu0 0
      %992 = vmatpush1.bf16.msra.mxu0 0
      %993 = vmatprep.subr.bf16.mxu0 0
      %994 = vmatpush1.bf16.msra.mxu0 0
      %995 = vmatprep.subr.bf16.mxu0 0
      %996 = vmatpush1.bf16.msra.mxu0 0
      %997 = vmatprep.mubr.bf16.mxu0 0
      %998 = vmatmul.mubr.bf16.gmra.mrb[0].mxu0 %v933
      %v999 = vpop.f32.mrb[0].mxu0
      %v1000 = vadd.f32 0.0, %v999
      %v1001 = vpop.f32.mrb[0].mxu0
      %v1002 = vadd.f32 0.0, %v1001
      %v1003 = vpop.f32.mrb[0].mxu0
      %v1004 = vadd.f32 0.0, %v1003
      %v1005 = vpop.f32.mrb[0].mxu0
      %v1006 = vadd.f32 0.0, %v1005
      %1007 = vmatprep.mubr.bf16.mxu0 0
      %1008 = vmatmul.mubr.bf16.gmra.mrb[0].mxu0 %v934
      %v1009 = vpop.f32.mrb[0].mxu0
      %v1010 = vadd.f32 0.0, %v1009
      %v1011 = vpop.f32.mrb[0].mxu0
      %v1012 = vadd.f32 0.0, %v1011
      %v1013 = vpop.f32.mrb[0].mxu0
      %v1014 = vadd.f32 0.0, %v1013
      %v1015 = vpop.f32.mrb[0].mxu0
      %v1016 = vadd.f32 0.0, %v1015
      %1017 = vmatprep.mubr.bf16.mxu0 0
      %1018 = vmatmul.mubr.bf16.gmra.mrb[0].mxu0 %v935
      %v1019 = vpop.f32.mrb[0].mxu0
      %v1020 = vadd.f32 0.0, %v1019
      %v1021 = vpop.f32.mrb[0].mxu0
      %v1022 = vadd.f32 0.0, %v1021
      %v1023 = vpop.f32.mrb[0].mxu0
      %v1024 = vadd.f32 0.0, %v1023
      %v1025 = vpop.f32.mrb[0].mxu0
      %v1026 = vadd.f32 0.0, %v1025
      %1027 = vmatprep.mubr.bf16.mxu0 0
      %1028 = vmatmul.mubr.bf16.gmra.mrb[0].mxu0 %v936
      %v1029 = vpop.f32.mrb[0].mxu0
      %v1030 = vadd.f32 0.0, %v1029
      %v1031 = vpop.f32.mrb[0].mxu0
      %v1032 = vadd.f32 0.0, %v1031
      %v1033 = vpop.f32.mrb[0].mxu0
      %v1034 = vadd.f32 0.0, %v1033
      %v1035 = vpop.f32.mrb[0].mxu0
      %v1036 = vadd.f32 0.0, %v1035
      %1037 = vmatprep.mubr.bf16.mxu0 0
      %1038 = vmatmul.mubr.bf16.gmra.mrb[0].mxu0 %v937
      %v1039 = vpop.f32.mrb[0].mxu0
      %v1040 = vadd.f32 0.0, %v1039
      %v1041 = vpop.f32.mrb[0].mxu0
      %v1042 = vadd.f32 0.0, %v1041
      %v1043 = vpop.f32.mrb[0].mxu0
      %v1044 = vadd.f32 0.0, %v1043
      %v1045 = vpop.f32.mrb[0].mxu0
      %v1046 = vadd.f32 0.0, %v1045
      %1047 = vmatprep.mubr.bf16.mxu0 0
      %1048 = vmatmul.mubr.bf16.gmra.mrb[0].mxu0 %v938
      %v1049 = vpop.f32.mrb[0].mxu0
      %v1050 = vadd.f32 0.0, %v1049
      %v1051 = vpop.f32.mrb[0].mxu0
      %v1052 = vadd.f32 0.0, %v1051
      %v1053 = vpop.f32.mrb[0].mxu0
      %v1054 = vadd.f32 0.0, %v1053
      %v1055 = vpop.f32.mrb[0].mxu0
      %v1056 = vadd.f32 0.0, %v1055
      %1057 = vmatprep.mubr.bf16.mxu0 0
      %1058 = vmatmul.mubr.bf16.gmra.mrb[0].mxu0 %v939
      %v1059 = vpop.f32.mrb[0].mxu0
      %v1060 = vadd.f32 0.0, %v1059
      %v1061 = vpop.f32.mrb[0].mxu0
      %v1062 = vadd.f32 0.0, %v1061
      %v1063 = vpop.f32.mrb[0].mxu0
      %v1064 = vadd.f32 0.0, %v1063
      %v1065 = vpop.f32.mrb[0].mxu0
      %v1066 = vadd.f32 0.0, %v1065
      %1067 = vmatprep.mubr.bf16.mxu0 0
      %1068 = vmatmul.mubr.bf16.gmra.mrb[0].mxu0 %v940
      %v1069 = vpop.f32.mrb[0].mxu0
      %v1070 = vadd.f32 0.0, %v1069
      %v1071 = vpop.f32.mrb[0].mxu0
      %v1072 = vadd.f32 0.0, %v1071
      %v1073 = vpop.f32.mrb[0].mxu0
      %v1074 = vadd.f32 0.0, %v1073
      %v1075 = vpop.f32.mrb[0].mxu0
      %v1076 = vadd.f32 0.0, %v1075
      %1077 = vmatprep.mubr.bf16.mxu0 0
      %1078 = vmatmul.mubr.bf16.gmra.mrb[0].mxu0 %v941
      %v1079 = vpop.f32.mrb[0].mxu0
      %v1080 = vadd.f32 0.0, %v1079
      %v1081 = vpop.f32.mrb[0].mxu0
      %v1082 = vadd.f32 0.0, %v1081
      %v1083 = vpop.f32.mrb[0].mxu0
      %v1084 = vadd.f32 0.0, %v1083
      %v1085 = vpop.f32.mrb[0].mxu0
      %v1086 = vadd.f32 0.0, %v1085
      %1087 = vmatprep.mubr.bf16.mxu0 0
      %1088 = vmatmul.mubr.bf16.gmra.mrb[0].mxu0 %v942
      %v1089 = vpop.f32.mrb[0].mxu0
      %v1090 = vadd.f32 0.0, %v1089
      %v1091 = vpop.f32.mrb[0].mxu0
      %v1092 = vadd.f32 0.0, %v1091
      %v1093 = vpop.f32.mrb[0].mxu0
      %v1094 = vadd.f32 0.0, %v1093
      %v1095 = vpop.f32.mrb[0].mxu0
      %v1096 = vadd.f32 0.0, %v1095
      %1097 = vmatprep.mubr.bf16.mxu0 0
      %1098 = vmatmul.mubr.bf16.gmra.mrb[0].mxu0 %v943
      %v1099 = vpop.f32.mrb[0].mxu0
      %v1100 = vadd.f32 0.0, %v1099
      %v1101 = vpop.f32.mrb[0].mxu0
      %v1102 = vadd.f32 0.0, %v1101
      %v1103 = vpop.f32.mrb[0].mxu0
      %v1104 = vadd.f32 0.0, %v1103
      %v1105 = vpop.f32.mrb[0].mxu0
      %v1106 = vadd.f32 0.0, %v1105
      %1107 = vmatprep.mubr.bf16.mxu0 0
      %1108 = vmatmul.mubr.bf16.gmra.mrb[0].mxu0 %v944
      %v1109 = vpop.f32.mrb[0].mxu0
      %v1110 = vadd.f32 0.0, %v1109
      %v1111 = vpop.f32.mrb[0].mxu0
      %v1112 = vadd.f32 0.0, %v1111
      %v1113 = vpop.f32.mrb[0].mxu0
      %v1114 = vadd.f32 0.0, %v1113
      %v1115 = vpop.f32.mrb[0].mxu0
      %v1116 = vadd.f32 0.0, %v1115
      %1117 = vmatprep.mubr.bf16.mxu0 0
      %1118 = vmatmul.mubr.bf16.gmra.mrb[0].mxu0 %v945
      %v1119 = vpop.f32.mrb[0].mxu0
      %v1120 = vadd.f32 0.0, %v1119
      %v1121 = vpop.f32.mrb[0].mxu0
      %v1122 = vadd.f32 0.0, %v1121
      %v1123 = vpop.f32.mrb[0].mxu0
      %v1124 = vadd.f32 0.0, %v1123
      %v1125 = vpop.f32.mrb[0].mxu0
      %v1126 = vadd.f32 0.0, %v1125
      %1127 = vmatprep.mubr.bf16.mxu0 0
      %1128 = vmatmul.mubr.bf16.gmra.mrb[0].mxu0 %v946
      %v1129 = vpop.f32.mrb[0].mxu0
      %v1130 = vadd.f32 0.0, %v1129
      %v1131 = vpop.f32.mrb[0].mxu0
      %v1132 = vadd.f32 0.0, %v1131
      %v1133 = vpop.f32.mrb[0].mxu0
      %v1134 = vadd.f32 0.0, %v1133
      %v1135 = vpop.f32.mrb[0].mxu0
      %v1136 = vadd.f32 0.0, %v1135
      %1137 = vmatprep.mubr.bf16.mxu0 0
      %1138 = vmatmul.mubr.bf16.gmra.mrb[0].mxu0 %v947
      %v1139 = vpop.f32.mrb[0].mxu0
      %v1140 = vadd.f32 0.0, %v1139
      %v1141 = vpop.f32.mrb[0].mxu0
      %v1142 = vadd.f32 0.0, %v1141
      %v1143 = vpop.f32.mrb[0].mxu0
      %v1144 = vadd.f32 0.0, %v1143
      %v1145 = vpop.f32.mrb[0].mxu0
      %v1146 = vadd.f32 0.0, %v1145
      %1147 = vmatprep.mubr.bf16.mxu0 0
      %1148 = vmatmul.mubr.bf16.gmra.mrb[0].mxu0 %v948
      %v1149 = vpop.f32.mrb[0].mxu0
      %v1150 = vadd.f32 0.0, %v1149
      %v1151 = vpop.f32.mrb[0].mxu0
      %v1152 = vadd.f32 0.0, %v1151
      %v1153 = vpop.f32.mrb[0].mxu0
      %v1154 = vadd.f32 0.0, %v1153
      %v1155 = vpop.f32.mrb[0].mxu0
      %v1156 = vadd.f32 0.0, %v1155
      %1157 = vdwg.mxu0
      %v1158 = vpack.c.bf16 %v1004, %v1000
      %v1159 = vpack.c.bf16 %v1006, %v1002
      %v1160 = vpack.c.bf16 %v1014, %v1010
      %v1161 = vpack.c.bf16 %v1016, %v1012
      %v1162 = vpack.c.bf16 %v1024, %v1020
      %v1163 = vpack.c.bf16 %v1026, %v1022
      %v1164 = vpack.c.bf16 %v1034, %v1030
      %v1165 = vpack.c.bf16 %v1036, %v1032
      %v1166 = vpack.c.bf16 %v1044, %v1040
      %v1167 = vpack.c.bf16 %v1046, %v1042
      %v1168 = vpack.c.bf16 %v1054, %v1050
      %v1169 = vpack.c.bf16 %v1056, %v1052
      %v1170 = vpack.c.bf16 %v1064, %v1060
      %v1171 = vpack.c.bf16 %v1066, %v1062
      %v1172 = vpack.c.bf16 %v1074, %v1070
      %v1173 = vpack.c.bf16 %v1076, %v1072
      %v1174 = vpack.c.bf16 %v1084, %v1080
      %v1175 = vpack.c.bf16 %v1086, %v1082
      %v1176 = vpack.c.bf16 %v1094, %v1090
      %v1177 = vpack.c.bf16 %v1096, %v1092
      %v1178 = vpack.c.bf16 %v1104, %v1100
      %v1179 = vpack.c.bf16 %v1106, %v1102
      %v1180 = vpack.c.bf16 %v1114, %v1110
      %v1181 = vpack.c.bf16 %v1116, %v1112
      %v1182 = vpack.c.bf16 %v1124, %v1120
      %v1183 = vpack.c.bf16 %v1126, %v1122
      %v1184 = vpack.c.bf16 %v1134, %v1130
      %v1185 = vpack.c.bf16 %v1136, %v1132
      %v1186 = vpack.c.bf16 %v1144, %v1140
      %v1187 = vpack.c.bf16 %v1146, %v1142
      %v1188 = vpack.c.bf16 %v1154, %v1150
      %v1189 = vpack.c.bf16 %v1156, %v1152
      %v1190 = vmul.bf16 %v1158, %v1158
      %v1191 = vmul.bf16 %v1159, %v1159
      %v1192 = vmul.bf16 %v1160, %v1160
      %v1193 = vmul.bf16 %v1161, %v1161
      %v1194 = vmul.bf16 %v1162, %v1162
      %v1195 = vmul.bf16 %v1163, %v1163
      %v1196 = vmul.bf16 %v1164, %v1164
      %v1197 = vmul.bf16 %v1165, %v1165
      %v1198 = vmul.bf16 %v1166, %v1166
      %v1199 = vmul.bf16 %v1167, %v1167
      %v1200 = vmul.bf16 %v1168, %v1168
      %v1201 = vmul.bf16 %v1169, %v1169
      %v1202 = vmul.bf16 %v1170, %v1170
      %v1203 = vmul.bf16 %v1171, %v1171
      %v1204 = vmul.bf16 %v1172, %v1172
      %v1205 = vmul.bf16 %v1173, %v1173
      %v1206 = vmul.bf16 %v1174, %v1174
      %v1207 = vmul.bf16 %v1175, %v1175
      %v1208 = vmul.bf16 %v1176, %v1176
      %v1209 = vmul.bf16 %v1177, %v1177
      %v1210 = vmul.bf16 %v1178, %v1178
      %v1211 = vmul.bf16 %v1179, %v1179
      %v1212 = vmul.bf16 %v1180, %v1180
      %v1213 = vmul.bf16 %v1181, %v1181
      %v1214 = vmul.bf16 %v1182, %v1182
      %v1215 = vmul.bf16 %v1183, %v1183
      %v1216 = vmul.bf16 %v1184, %v1184
      %v1217 = vmul.bf16 %v1185, %v1185
      %v1218 = vmul.bf16 %v1186, %v1186
      %v1219 = vmul.bf16 %v1187, %v1187
      %v1220 = vmul.bf16 %v1188, %v1188
      %v1221 = vmul.bf16 %v1189, %v1189
      %v1222 = vmul.bf16 %v1158, %v1190
      %v1223 = vmul.bf16 %v1159, %v1191
      %v1224 = vmul.bf16 %v1160, %v1192
      %v1225 = vmul.bf16 %v1161, %v1193
      %v1226 = vmul.bf16 %v1162, %v1194
      %v1227 = vmul.bf16 %v1163, %v1195
      %v1228 = vmul.bf16 %v1164, %v1196
      %v1229 = vmul.bf16 %v1165, %v1197
      %v1230 = vmul.bf16 %v1166, %v1198
      %v1231 = vmul.bf16 %v1167, %v1199
      %v1232 = vmul.bf16 %v1168, %v1200
      %v1233 = vmul.bf16 %v1169, %v1201
      %v1234 = vmul.bf16 %v1170, %v1202
      %v1235 = vmul.bf16 %v1171, %v1203
      %v1236 = vmul.bf16 %v1172, %v1204
      %v1237 = vmul.bf16 %v1173, %v1205
      %v1238 = vmul.bf16 %v1174, %v1206
      %v1239 = vmul.bf16 %v1175, %v1207
      %v1240 = vmul.bf16 %v1176, %v1208
      %v1241 = vmul.bf16 %v1177, %v1209
      %v1242 = vmul.bf16 %v1178, %v1210
      %v1243 = vmul.bf16 %v1179, %v1211
      %v1244 = vmul.bf16 %v1180, %v1212
      %v1245 = vmul.bf16 %v1181, %v1213
      %v1246 = vmul.bf16 %v1182, %v1214
      %v1247 = vmul.bf16 %v1183, %v1215
      %v1248 = vmul.bf16 %v1184, %v1216
      %v1249 = vmul.bf16 %v1185, %v1217
      %v1250 = vmul.bf16 %v1186, %v1218
      %v1251 = vmul.bf16 %v1187, %v1219
      %v1252 = vmul.bf16 %v1188, %v1220
      %v1253 = vmul.bf16 %v1189, %v1221
      %v1254 = vmul.bf16 %v1222, 1027030327
      %v1255 = vmul.bf16 %v1223, 1027030327
      %v1256 = vmul.bf16 %v1224, 1027030327
      %v1257 = vmul.bf16 %v1225, 1027030327
      %v1258 = vmul.bf16 %v1226, 1027030327
      %v1259 = vmul.bf16 %v1227, 1027030327
      %v1260 = vmul.bf16 %v1228, 1027030327
      %v1261 = vmul.bf16 %v1229, 1027030327
      %v1262 = vmul.bf16 %v1230, 1027030327
      %v1263 = vmul.bf16 %v1231, 1027030327
      %v1264 = vmul.bf16 %v1232, 1027030327
      %v1265 = vmul.bf16 %v1233, 1027030327
      %v1266 = vmul.bf16 %v1234, 1027030327
      %v1267 = vmul.bf16 %v1235, 1027030327
      %v1268 = vmul.bf16 %v1236, 1027030327
      %v1269 = vmul.bf16 %v1237, 1027030327
      %v1270 = vmul.bf16 %v1238, 1027030327
      %v1271 = vmul.bf16 %v1239, 1027030327
      %v1272 = vmul.bf16 %v1240, 1027030327
      %v1273 = vmul.bf16 %v1241, 1027030327
      %v1274 = vmul.bf16 %v1242, 1027030327
      %v1275 = vmul.bf16 %v1243, 1027030327
      %v1276 = vmul.bf16 %v1244, 1027030327
      %v1277 = vmul.bf16 %v1245, 1027030327
      %v1278 = vmul.bf16 %v1246, 1027030327
      %v1279 = vmul.bf16 %v1247, 1027030327
      %v1280 = vmul.bf16 %v1248, 1027030327
      %v1281 = vmul.bf16 %v1249, 1027030327
      %v1282 = vmul.bf16 %v1250, 1027030327
      %v1283 = vmul.bf16 %v1251, 1027030327
      %v1284 = vmul.bf16 %v1252, 1027030327
      %v1285 = vmul.bf16 %v1253, 1027030327
      %v1286 = vadd.bf16 %v1158, %v1254
      %v1287 = vadd.bf16 %v1159, %v1255
      %v1288 = vadd.bf16 %v1160, %v1256
      %v1289 = vadd.bf16 %v1161, %v1257
      %v1290 = vadd.bf16 %v1162, %v1258
      %v1291 = vadd.bf16 %v1163, %v1259
      %v1292 = vadd.bf16 %v1164, %v1260
      %v1293 = vadd.bf16 %v1165, %v1261
      %v1294 = vadd.bf16 %v1166, %v1262
      %v1295 = vadd.bf16 %v1167, %v1263
      %v1296 = vadd.bf16 %v1168, %v1264
      %v1297 = vadd.bf16 %v1169, %v1265
      %v1298 = vadd.bf16 %v1170, %v1266
      %v1299 = vadd.bf16 %v1171, %v1267
      %v1300 = vadd.bf16 %v1172, %v1268
      %v1301 = vadd.bf16 %v1173, %v1269
      %v1302 = vadd.bf16 %v1174, %v1270
      %v1303 = vadd.bf16 %v1175, %v1271
      %v1304 = vadd.bf16 %v1176, %v1272
      %v1305 = vadd.bf16 %v1177, %v1273
      %v1306 = vadd.bf16 %v1178, %v1274
      %v1307 = vadd.bf16 %v1179, %v1275
      %v1308 = vadd.bf16 %v1180, %v1276
      %v1309 = vadd.bf16 %v1181, %v1277
      %v1310 = vadd.bf16 %v1182, %v1278
      %v1311 = vadd.bf16 %v1183, %v1279
      %v1312 = vadd.bf16 %v1184, %v1280
      %v1313 = vadd.bf16 %v1185, %v1281
      %v1314 = vadd.bf16 %v1186, %v1282
      %v1315 = vadd.bf16 %v1187, %v1283
      %v1316 = vadd.bf16 %v1188, %v1284
      %v1317 = vadd.bf16 %v1189, %v1285
      %v1318 = vmul.bf16 %v1286, 1061961548
      %v1319 = vmul.bf16 %v1287, 1061961548
      %v1320 = vmul.bf16 %v1288, 1061961548
      %v1321 = vmul.bf16 %v1289, 1061961548
      %v1322 = vmul.bf16 %v1290, 1061961548
      %v1323 = vmul.bf16 %v1291, 1061961548
      %v1324 = vmul.bf16 %v1292, 1061961548
      %v1325 = vmul.bf16 %v1293, 1061961548
      %v1326 = vmul.bf16 %v1294, 1061961548
      %v1327 = vmul.bf16 %v1295, 1061961548
      %v1328 = vmul.bf16 %v1296, 1061961548
      %v1329 = vmul.bf16 %v1297, 1061961548
      %v1330 = vmul.bf16 %v1298, 1061961548
      %v1331 = vmul.bf16 %v1299, 1061961548
      %v1332 = vmul.bf16 %v1300, 1061961548
      %v1333 = vmul.bf16 %v1301, 1061961548
      %v1334 = vmul.bf16 %v1302, 1061961548
      %v1335 = vmul.bf16 %v1303, 1061961548
      %v1336 = vmul.bf16 %v1304, 1061961548
      %v1337 = vmul.bf16 %v1305, 1061961548
      %v1338 = vmul.bf16 %v1306, 1061961548
      %v1339 = vmul.bf16 %v1307, 1061961548
      %v1340 = vmul.bf16 %v1308, 1061961548
      %v1341 = vmul.bf16 %v1309, 1061961548
      %v1342 = vmul.bf16 %v1310, 1061961548
      %v1343 = vmul.bf16 %v1311, 1061961548
      %v1344 = vmul.bf16 %v1312, 1061961548
      %v1345 = vmul.bf16 %v1313, 1061961548
      %v1346 = vmul.bf16 %v1314, 1061961548
      %v1347 = vmul.bf16 %v1315, 1061961548
      %v1348 = vmul.bf16 %v1316, 1061961548
      %v1349 = vmul.bf16 %v1317, 1061961548
      %v1350 = vtanh.bf16.pop %v1318
      %v1351 = vtanh.bf16.pop %v1319
      %v1352 = vtanh.bf16.pop %v1320
      %v1353 = vtanh.bf16.pop %v1321
      %v1354 = vtanh.bf16.pop %v1322
      %v1355 = vtanh.bf16.pop %v1323
      %v1356 = vtanh.bf16.pop %v1324
      %v1357 = vtanh.bf16.pop %v1325
      %v1358 = vtanh.bf16.pop %v1326
      %v1359 = vtanh.bf16.pop %v1327
      %v1360 = vtanh.bf16.pop %v1328
      %v1361 = vtanh.bf16.pop %v1329
      %v1362 = vtanh.bf16.pop %v1330
      %v1363 = vtanh.bf16.pop %v1331
      %v1364 = vtanh.bf16.pop %v1332
      %v1365 = vtanh.bf16.pop %v1333
      %v1366 = vtanh.bf16.pop %v1334
      %v1367 = vtanh.bf16.pop %v1335
      %v1368 = vtanh.bf16.pop %v1336
      %v1369 = vtanh.bf16.pop %v1337
      %v1370 = vtanh.bf16.pop %v1338
      %v1371 = vtanh.bf16.pop %v1339
      %v1372 = vtanh.bf16.pop %v1340
      %v1373 = vtanh.bf16.pop %v1341
      %v1374 = vtanh.bf16.pop %v1342
      %v1375 = vtanh.bf16.pop %v1343
      %v1376 = vtanh.bf16.pop %v1344
      %v1377 = vtanh.bf16.pop %v1345
      %v1378 = vtanh.bf16.pop %v1346
      %v1379 = vtanh.bf16.pop %v1347
      %v1380 = vtanh.bf16.pop %v1348
      %v1381 = vtanh.bf16.pop %v1349
      %v1382 = vadd.bf16 %v1350, 1065369472
      %v1383 = vadd.bf16 %v1351, 1065369472
      %v1384 = vadd.bf16 %v1352, 1065369472
      %v1385 = vadd.bf16 %v1353, 1065369472
      %v1386 = vadd.bf16 %v1354, 1065369472
      %v1387 = vadd.bf16 %v1355, 1065369472
      %v1388 = vadd.bf16 %v1356, 1065369472
      %v1389 = vadd.bf16 %v1357, 1065369472
      %v1390 = vadd.bf16 %v1358, 1065369472
      %v1391 = vadd.bf16 %v1359, 1065369472
      %v1392 = vadd.bf16 %v1360, 1065369472
      %v1393 = vadd.bf16 %v1361, 1065369472
      %v1394 = vadd.bf16 %v1362, 1065369472
      %v1395 = vadd.bf16 %v1363, 1065369472
      %v1396 = vadd.bf16 %v1364, 1065369472
      %v1397 = vadd.bf16 %v1365, 1065369472
      %v1398 = vadd.bf16 %v1366, 1065369472
      %v1399 = vadd.bf16 %v1367, 1065369472
      %v1400 = vadd.bf16 %v1368, 1065369472
      %v1401 = vadd.bf16 %v1369, 1065369472
      %v1402 = vadd.bf16 %v1370, 1065369472
      %v1403 = vadd.bf16 %v1371, 1065369472
      %v1404 = vadd.bf16 %v1372, 1065369472
      %v1405 = vadd.bf16 %v1373, 1065369472
      %v1406 = vadd.bf16 %v1374, 1065369472
      %v1407 = vadd.bf16 %v1375, 1065369472
      %v1408 = vadd.bf16 %v1376, 1065369472
      %v1409 = vadd.bf16 %v1377, 1065369472
      %v1410 = vadd.bf16 %v1378, 1065369472
      %v1411 = vadd.bf16 %v1379, 1065369472
      %v1412 = vadd.bf16 %v1380, 1065369472
      %v1413 = vadd.bf16 %v1381, 1065369472
      %v1414 = vmul.bf16 %v1382, 1056980736
      %v1415 = vmul.bf16 %v1383, 1056980736
      %v1416 = vmul.bf16 %v1384, 1056980736
      %v1417 = vmul.bf16 %v1385, 1056980736
      %v1418 = vmul.bf16 %v1386, 1056980736
      %v1419 = vmul.bf16 %v1387, 1056980736
      %v1420 = vmul.bf16 %v1388, 1056980736
      %v1421 = vmul.bf16 %v1389, 1056980736
      %v1422 = vmul.bf16 %v1390, 1056980736
      %v1423 = vmul.bf16 %v1391, 1056980736
      %v1424 = vmul.bf16 %v1392, 1056980736
      %v1425 = vmul.bf16 %v1393, 1056980736
      %v1426 = vmul.bf16 %v1394, 1056980736
      %v1427 = vmul.bf16 %v1395, 1056980736
      %v1428 = vmul.bf16 %v1396, 1056980736
      %v1429 = vmul.bf16 %v1397, 1056980736
      %v1430 = vmul.bf16 %v1398, 1056980736
      %v1431 = vmul.bf16 %v1399, 1056980736
      %v1432 = vmul.bf16 %v1400, 1056980736
      %v1433 = vmul.bf16 %v1401, 1056980736
      %v1434 = vmul.bf16 %v1402, 1056980736
      %v1435 = vmul.bf16 %v1403, 1056980736
      %v1436 = vmul.bf16 %v1404, 1056980736
      %v1437 = vmul.bf16 %v1405, 1056980736
      %v1438 = vmul.bf16 %v1406, 1056980736
      %v1439 = vmul.bf16 %v1407, 1056980736
      %v1440 = vmul.bf16 %v1408, 1056980736
      %v1441 = vmul.bf16 %v1409, 1056980736
      %v1442 = vmul.bf16 %v1410, 1056980736
      %v1443 = vmul.bf16 %v1411, 1056980736
      %v1444 = vmul.bf16 %v1412, 1056980736
      %v1445 = vmul.bf16 %v1413, 1056980736
      %v1446 = vmul.bf16 %v1158, %v1414
      %v1447 = vmul.bf16 %v1159, %v1415
      %v1448 = vmul.bf16 %v1160, %v1416
      %v1449 = vmul.bf16 %v1161, %v1417
      %v1450 = vmul.bf16 %v1162, %v1418
      %v1451 = vmul.bf16 %v1163, %v1419
      %v1452 = vmul.bf16 %v1164, %v1420
      %v1453 = vmul.bf16 %v1165, %v1421
      %v1454 = vmul.bf16 %v1166, %v1422
      %v1455 = vmul.bf16 %v1167, %v1423
      %v1456 = vmul.bf16 %v1168, %v1424
      %v1457 = vmul.bf16 %v1169, %v1425
      %v1458 = vmul.bf16 %v1170, %v1426
      %v1459 = vmul.bf16 %v1171, %v1427
      %v1460 = vmul.bf16 %v1172, %v1428
      %v1461 = vmul.bf16 %v1173, %v1429
      %v1462 = vmul.bf16 %v1174, %v1430
      %v1463 = vmul.bf16 %v1175, %v1431
      %v1464 = vmul.bf16 %v1176, %v1432
      %v1465 = vmul.bf16 %v1177, %v1433
      %v1466 = vmul.bf16 %v1178, %v1434
      %v1467 = vmul.bf16 %v1179, %v1435
      %v1468 = vmul.bf16 %v1180, %v1436
      %v1469 = vmul.bf16 %v1181, %v1437
      %v1470 = vmul.bf16 %v1182, %v1438
      %v1471 = vmul.bf16 %v1183, %v1439
      %v1472 = vmul.bf16 %v1184, %v1440
      %v1473 = vmul.bf16 %v1185, %v1441
      %v1474 = vmul.bf16 %v1186, %v1442
      %v1475 = vmul.bf16 %v1187, %v1443
      %v1476 = vmul.bf16 %v1188, %v1444
      %v1477 = vmul.bf16 %v1189, %v1445
      %v1478 = vld [vmem:[%s3] sm:$0xff]
      %v1479 = vld [vmem:[%s3 + $0x8] sm:$0xff]
      %v1480 = vld [vmem:[%s3 + $0x10] sm:$0xff]
      %v1481 = vld [vmem:[%s3 + $0x18] sm:$0xff]
      %v1482 = vld [vmem:[%s3 + $0x20] sm:$0xff]
      %v1483 = vld [vmem:[%s3 + $0x28] sm:$0xff]
      %v1484 = vld [vmem:[%s3 + $0x30] sm:$0xff]
      %v1485 = vld [vmem:[%s3 + $0x38] sm:$0xff]
      %v1486 = vld [vmem:[%s3 + $0x40] sm:$0xff]
      %v1487 = vld [vmem:[%s3 + $0x48] sm:$0xff]
      %v1488 = vld [vmem:[%s3 + $0x50] sm:$0xff]
      %v1489 = vld [vmem:[%s3 + $0x58] sm:$0xff]
      %v1490 = vld [vmem:[%s3 + $0x60] sm:$0xff]
      %v1491 = vld [vmem:[%s3 + $0x68] sm:$0xff]
      %v1492 = vld [vmem:[%s3 + $0x70] sm:$0xff]
      %v1493 = vld [vmem:[%s3 + $0x78] sm:$0xff]
      %v1510 = vunpack.c.l.b16 %v1478
      %v1511 = vunpack.c.h.b16 %v1478
      %v1512 = vunpack.c.l.b16 %v1479
      %v1513 = vunpack.c.h.b16 %v1479
      %v1514 = vunpack.c.l.b16 %v1480
      %v1515 = vunpack.c.h.b16 %v1480
      %v1516 = vunpack.c.l.b16 %v1481
      %v1517 = vunpack.c.h.b16 %v1481
      %v1518 = vunpack.c.l.b16 %v1482
      %v1519 = vunpack.c.h.b16 %v1482
      %v1520 = vunpack.c.l.b16 %v1483
      %v1521 = vunpack.c.h.b16 %v1483
      %v1522 = vunpack.c.l.b16 %v1484
      %v1523 = vunpack.c.h.b16 %v1484
      %v1524 = vunpack.c.l.b16 %v1485
      %v1525 = vunpack.c.h.b16 %v1485
      %v1526 = vunpack.c.l.b16 %v1486
      %v1527 = vunpack.c.h.b16 %v1486
      %v1528 = vunpack.c.l.b16 %v1487
      %v1529 = vunpack.c.h.b16 %v1487
      %v1530 = vunpack.c.l.b16 %v1488
      %v1531 = vunpack.c.h.b16 %v1488
      %v1532 = vunpack.c.l.b16 %v1489
      %v1533 = vunpack.c.h.b16 %v1489
      %v1534 = vunpack.c.l.b16 %v1490
      %v1535 = vunpack.c.h.b16 %v1490
      %v1536 = vunpack.c.l.b16 %v1491
      %v1537 = vunpack.c.h.b16 %v1491
      %v1538 = vunpack.c.l.b16 %v1492
      %v1539 = vunpack.c.h.b16 %v1492
      %v1540 = vunpack.c.l.b16 %v1493
      %v1541 = vunpack.c.h.b16 %v1493
      %v1542 = vpack.c.b16 %v1512, %v1510
      %v1543 = vpack.c.b16 %v1513, %v1511
      %v1544 = vpack.c.b16 %v1516, %v1514
      %v1545 = vpack.c.b16 %v1517, %v1515
      %v1546 = vpack.c.b16 %v1520, %v1518
      %v1547 = vpack.c.b16 %v1521, %v1519
      %v1548 = vpack.c.b16 %v1524, %v1522
      %v1549 = vpack.c.b16 %v1525, %v1523
      %v1550 = vpack.c.b16 %v1528, %v1526
      %v1551 = vpack.c.b16 %v1529, %v1527
      %v1552 = vpack.c.b16 %v1532, %v1530
      %v1553 = vpack.c.b16 %v1533, %v1531
      %v1554 = vpack.c.b16 %v1536, %v1534
      %v1555 = vpack.c.b16 %v1537, %v1535
      %v1556 = vpack.c.b16 %v1540, %v1538
      %v1557 = vpack.c.b16 %v1541, %v1539
      %1574 = vmatprep.subr.bf16.mxu0 %v1447
      %1575 = vmatpush1.bf16.msra.mxu0 %v1446
      %1576 = vmatprep.subr.bf16.mxu0 %v1449
      %1577 = vmatpush1.bf16.msra.mxu0 %v1448
      %1578 = vmatprep.subr.bf16.mxu0 %v1451
      %1579 = vmatpush1.bf16.msra.mxu0 %v1450
      %1580 = vmatprep.subr.bf16.mxu0 %v1453
      %1581 = vmatpush1.bf16.msra.mxu0 %v1452
      %1582 = vmatprep.subr.bf16.mxu0 %v1455
      %1583 = vmatpush1.bf16.msra.mxu0 %v1454
      %1584 = vmatprep.subr.bf16.mxu0 %v1457
      %1585 = vmatpush1.bf16.msra.mxu0 %v1456
      %1586 = vmatprep.subr.bf16.mxu0 %v1459
      %1587 = vmatpush1.bf16.msra.mxu0 %v1458
      %1588 = vmatprep.subr.bf16.mxu0 %v1461
      %1589 = vmatpush1.bf16.msra.mxu0 %v1460
      %1590 = vmatprep.subr.bf16.mxu0 %v1463
      %1591 = vmatpush1.bf16.msra.mxu0 %v1462
      %1592 = vmatprep.subr.bf16.mxu0 %v1465
      %1593 = vmatpush1.bf16.msra.mxu0 %v1464
      %1594 = vmatprep.subr.bf16.mxu0 %v1467
      %1595 = vmatpush1.bf16.msra.mxu0 %v1466
      %1596 = vmatprep.subr.bf16.mxu0 %v1469
      %1597 = vmatpush1.bf16.msra.mxu0 %v1468
      %1598 = vmatprep.subr.bf16.mxu0 %v1471
      %1599 = vmatpush1.bf16.msra.mxu0 %v1470
      %1600 = vmatprep.subr.bf16.mxu0 %v1473
      %1601 = vmatpush1.bf16.msra.mxu0 %v1472
      %1602 = vmatprep.subr.bf16.mxu0 %v1475
      %1603 = vmatpush1.bf16.msra.mxu0 %v1474
      %1604 = vmatprep.subr.bf16.mxu0 %v1477
      %1605 = vmatpush1.bf16.msra.mxu0 %v1476
      %1606 = vmatprep.mubr.bf16.mxu0 %v1543
      %1607 = vmatmul.mubr.bf16.gmra.mrb[0].mxu0 %v1542
      %v1608 = vpop.f32.mrb[0].mxu0
      %v1609 = vadd.f32 0.0, %v1608
      %v1610 = vpop.f32.mrb[0].mxu0
      %v1611 = vadd.f32 0.0, %v1610
      %v1612 = vpop.f32.mrb[0].mxu0
      %v1613 = vadd.f32 0.0, %v1612
      %v1614 = vpop.f32.mrb[0].mxu0
      %v1615 = vadd.f32 0.0, %v1614
      %1616 = vmatprep.mubr.bf16.mxu0 %v1545
      %1617 = vmatmul.mubr.bf16.gmra.mrb[0].mxu0 %v1544
      %v1618 = vpop.f32.mrb[0].mxu0
      %v1619 = vadd.f32 0.0, %v1618
      %v1620 = vpop.f32.mrb[0].mxu0
      %v1621 = vadd.f32 0.0, %v1620
      %v1622 = vpop.f32.mrb[0].mxu0
      %v1623 = vadd.f32 0.0, %v1622
      %v1624 = vpop.f32.mrb[0].mxu0
      %v1625 = vadd.f32 0.0, %v1624
      %1626 = vmatprep.mubr.bf16.mxu0 %v1547
      %1627 = vmatmul.mubr.bf16.gmra.mrb[0].mxu0 %v1546
      %v1628 = vpop.f32.mrb[0].mxu0
      %v1629 = vadd.f32 0.0, %v1628
      %v1630 = vpop.f32.mrb[0].mxu0
      %v1631 = vadd.f32 0.0, %v1630
      %v1632 = vpop.f32.mrb[0].mxu0
      %v1633 = vadd.f32 0.0, %v1632
      %v1634 = vpop.f32.mrb[0].mxu0
      %v1635 = vadd.f32 0.0, %v1634
      %1636 = vmatprep.mubr.bf16.mxu0 %v1549
      %1637 = vmatmul.mubr.bf16.gmra.mrb[0].mxu0 %v1548
      %v1638 = vpop.f32.mrb[0].mxu0
      %v1639 = vadd.f32 0.0, %v1638
      %v1640 = vpop.f32.mrb[0].mxu0
      %v1641 = vadd.f32 0.0, %v1640
      %v1642 = vpop.f32.mrb[0].mxu0
      %v1643 = vadd.f32 0.0, %v1642
      %v1644 = vpop.f32.mrb[0].mxu0
      %v1645 = vadd.f32 0.0, %v1644
      %1646 = vmatprep.mubr.bf16.mxu0 %v1551
      %1647 = vmatmul.mubr.bf16.gmra.mrb[0].mxu0 %v1550
      %v1648 = vpop.f32.mrb[0].mxu0
      %v1649 = vadd.f32 0.0, %v1648
      %v1650 = vpop.f32.mrb[0].mxu0
      %v1651 = vadd.f32 0.0, %v1650
      %v1652 = vpop.f32.mrb[0].mxu0
      %v1653 = vadd.f32 0.0, %v1652
      %v1654 = vpop.f32.mrb[0].mxu0
      %v1655 = vadd.f32 0.0, %v1654
      %1656 = vmatprep.mubr.bf16.mxu0 %v1553
      %1657 = vmatmul.mubr.bf16.gmra.mrb[0].mxu0 %v1552
      %v1658 = vpop.f32.mrb[0].mxu0
      %v1659 = vadd.f32 0.0, %v1658
      %v1660 = vpop.f32.mrb[0].mxu0
      %v1661 = vadd.f32 0.0, %v1660
      %v1662 = vpop.f32.mrb[0].mxu0
      %v1663 = vadd.f32 0.0, %v1662
      %v1664 = vpop.f32.mrb[0].mxu0
      %v1665 = vadd.f32 0.0, %v1664
      %1666 = vmatprep.mubr.bf16.mxu0 %v1555
      %1667 = vmatmul.mubr.bf16.gmra.mrb[0].mxu0 %v1554
      %v1668 = vpop.f32.mrb[0].mxu0
      %v1669 = vadd.f32 0.0, %v1668
      %v1670 = vpop.f32.mrb[0].mxu0
      %v1671 = vadd.f32 0.0, %v1670
      %v1672 = vpop.f32.mrb[0].mxu0
      %v1673 = vadd.f32 0.0, %v1672
      %v1674 = vpop.f32.mrb[0].mxu0
      %v1675 = vadd.f32 0.0, %v1674
      %1676 = vmatprep.mubr.bf16.mxu0 %v1557
      %1677 = vmatmul.mubr.bf16.gmra.mrb[0].mxu0 %v1556
      %v1678 = vpop.f32.mrb[0].mxu0
      %v1679 = vadd.f32 0.0, %v1678
      %v1680 = vpop.f32.mrb[0].mxu0
      %v1681 = vadd.f32 0.0, %v1680
      %v1682 = vpop.f32.mrb[0].mxu0
      %v1683 = vadd.f32 0.0, %v1682
      %v1684 = vpop.f32.mrb[0].mxu0
      %v1685 = vadd.f32 0.0, %v1684
      %1686 = vdwg.mxu0
      %v1687 = vmax.f32 %v1609, %v1619
      %v1688 = vmax.f32 %v1613, %v1623
      %v1689 = vmax.f32 %v1687, %v1629
      %v1690 = vmax.f32 %v1688, %v1633
      %v1691 = vmax.f32 %v1689, %v1639
      %v1692 = vmax.f32 %v1690, %v1643
      %v1693 = vmax.f32 %v1691, %v1649
      %v1694 = vmax.f32 %v1692, %v1653
      %v1695 = vmax.f32 %v1693, %v1659
      %v1696 = vmax.f32 %v1694, %v1663
      %v1697 = vmax.f32 %v1695, %v1669
      %v1698 = vmax.f32 %v1696, %v1673
      %v1699 = vmax.f32 %v1697, %v1679
      %v1700 = vmax.f32 %v1698, %v1683
      %v1701 = vmax.f32 %v1699, %v1700
      %v1702 = vrot.slane %v1701, 4
      %v1703 = vmax.f32 %v1701, %v1702
      %v1704 = vrot.slane %v1703, 2
      %v1705 = vmax.f32 %v1703, %v1704
      %v1706 = vrot.slane %v1705, 1
      %v1707 = vmax.f32 %v1705, %v1706
      %v1708 = vmax.f32 %v1611, %v1621
      %v1709 = vmax.f32 %v1615, %v1625
      %v1710 = vmax.f32 %v1708, %v1631
      %v1711 = vmax.f32 %v1709, %v1635
      %v1712 = vmax.f32 %v1710, %v1641
      %v1713 = vmax.f32 %v1711, %v1645
      %v1714 = vmax.f32 %v1712, %v1651
      %v1715 = vmax.f32 %v1713, %v1655
      %v1716 = vmax.f32 %v1714, %v1661
      %v1717 = vmax.f32 %v1715, %v1665
      %v1718 = vmax.f32 %v1716, %v1671
      %v1719 = vmax.f32 %v1717, %v1675
      %v1720 = vmax.f32 %v1718, %v1681
      %v1721 = vmax.f32 %v1719, %v1685
      %v1722 = vmax.f32 %v1720, %v1721
      %v1723 = vrot.slane %v1722, 4
      %v1724 = vmax.f32 %v1722, %v1723
      %v1725 = vrot.slane %v1724, 2
      %v1726 = vmax.f32 %v1724, %v1725
      %v1727 = vrot.slane %v1726, 1
      %v1728 = vmax.f32 %v1726, %v1727
      %v1729 = vsub.f32 %v1609, %v1707
      %v1730 = vsub.f32 %v1611, %v1728
      %v1731 = vsub.f32 %v1613, %v1707
      %v1732 = vsub.f32 %v1615, %v1728
      %v1733 = vsub.f32 %v1619, %v1707
      %v1734 = vsub.f32 %v1621, %v1728
      %v1735 = vsub.f32 %v1623, %v1707
      %v1736 = vsub.f32 %v1625, %v1728
      %v1737 = vsub.f32 %v1629, %v1707
      %v1738 = vsub.f32 %v1631, %v1728
      %v1739 = vsub.f32 %v1633, %v1707
      %v1740 = vsub.f32 %v1635, %v1728
      %v1741 = vsub.f32 %v1639, %v1707
      %v1742 = vsub.f32 %v1641, %v1728
      %v1743 = vsub.f32 %v1643, %v1707
      %v1744 = vsub.f32 %v1645, %v1728
      %v1745 = vsub.f32 %v1649, %v1707
      %v1746 = vsub.f32 %v1651, %v1728
      %v1747 = vsub.f32 %v1653, %v1707
      %v1748 = vsub.f32 %v1655, %v1728
      %v1749 = vsub.f32 %v1659, %v1707
      %v1750 = vsub.f32 %v1661, %v1728
      %v1751 = vsub.f32 %v1663, %v1707
      %v1752 = vsub.f32 %v1665, %v1728
      %v1753 = vsub.f32 %v1669, %v1707
      %v1754 = vsub.f32 %v1671, %v1728
      %v1755 = vsub.f32 %v1673, %v1707
      %v1756 = vsub.f32 %v1675, %v1728
      %v1757 = vsub.f32 %v1679, %v1707
      %v1758 = vsub.f32 %v1681, %v1728
      %v1759 = vsub.f32 %v1683, %v1707
      %v1760 = vsub.f32 %v1685, %v1728
      %v1761 = vmul.f32 %v1729, 1.442695
      %v1762 = vpow.pop %v1761
      %v1763 = vmul.f32 %v1730, 1.442695
      %v1764 = vpow.pop %v1763
      %v1765 = vmul.f32 %v1731, 1.442695
      %v1766 = vpow.pop %v1765
      %v1767 = vmul.f32 %v1732, 1.442695
      %v1768 = vpow.pop %v1767
      %v1769 = vmul.f32 %v1733, 1.442695
      %v1770 = vpow.pop %v1769
      %v1771 = vmul.f32 %v1734, 1.442695
      %v1772 = vpow.pop %v1771
      %v1773 = vmul.f32 %v1735, 1.442695
      %v1774 = vpow.pop %v1773
      %v1775 = vmul.f32 %v1736, 1.442695
      %v1776 = vpow.pop %v1775
      %v1777 = vmul.f32 %v1737, 1.442695
      %v1778 = vpow.pop %v1777
      %v1779 = vmul.f32 %v1738, 1.442695
      %v1780 = vpow.pop %v1779
      %v1781 = vmul.f32 %v1739, 1.442695
      %v1782 = vpow.pop %v1781
      %v1783 = vmul.f32 %v1740, 1.442695
      %v1784 = vpow.pop %v1783
      %v1785 = vmul.f32 %v1741, 1.442695
      %v1786 = vpow.pop %v1785
      %v1787 = vmul.f32 %v1742, 1.442695
      %v1788 = vpow.pop %v1787
      %v1789 = vmul.f32 %v1743, 1.442695
      %v1790 = vpow.pop %v1789
      %v1791 = vmul.f32 %v1744, 1.442695
      %v1792 = vpow.pop %v1791
      %v1793 = vmul.f32 %v1745, 1.442695
      %v1794 = vpow.pop %v1793
      %v1795 = vmul.f32 %v1746, 1.442695
      %v1796 = vpow.pop %v1795
      %v1797 = vmul.f32 %v1747, 1.442695
      %v1798 = vpow.pop %v1797
      %v1799 = vmul.f32 %v1748, 1.442695
      %v1800 = vpow.pop %v1799
      %v1801 = vmul.f32 %v1749, 1.442695
      %v1802 = vpow.pop %v1801
      %v1803 = vmul.f32 %v1750, 1.442695
      %v1804 = vpow.pop %v1803
      %v1805 = vmul.f32 %v1751, 1.442695
      %v1806 = vpow.pop %v1805
      %v1807 = vmul.f32 %v1752, 1.442695
      %v1808 = vpow.pop %v1807
      %v1809 = vmul.f32 %v1753, 1.442695
      %v1810 = vpow.pop %v1809
      %v1811 = vmul.f32 %v1754, 1.442695
      %v1812 = vpow.pop %v1811
      %v1813 = vmul.f32 %v1755, 1.442695
      %v1814 = vpow.pop %v1813
      %v1815 = vmul.f32 %v1756, 1.442695
      %v1816 = vpow.pop %v1815
      %v1817 = vmul.f32 %v1757, 1.442695
      %v1818 = vpow.pop %v1817
      %v1819 = vmul.f32 %v1758, 1.442695
      %v1820 = vpow.pop %v1819
      %v1821 = vmul.f32 %v1759, 1.442695
      %v1822 = vpow.pop %v1821
      %v1823 = vmul.f32 %v1760, 1.442695
      %v1824 = vpow.pop %v1823
      %v1825 = vadd.f32 %v1762, %v1766
      %v1826 = vadd.f32 %v1825, %v1770
      %v1827 = vadd.f32 %v1826, %v1774
      %v1828 = vadd.f32 %v1827, %v1778
      %v1829 = vadd.f32 %v1828, %v1782
      %v1830 = vadd.f32 %v1829, %v1786
      %v1831 = vadd.f32 %v1830, %v1790
      %v1832 = vadd.f32 %v1831, %v1794
      %v1833 = vadd.f32 %v1832, %v1798
      %v1834 = vadd.f32 %v1833, %v1802
      %v1835 = vadd.f32 %v1834, %v1806
      %v1836 = vadd.f32 %v1835, %v1810
      %v1837 = vadd.f32 %v1836, %v1814
      %v1838 = vadd.f32 %v1837, %v1818
      %v1839 = vadd.f32 %v1838, %v1822
      %v1840 = vrot.slane %v1839, 4
      %v1841 = vadd.f32 %v1839, %v1840
      %v1842 = vrot.slane %v1841, 2
      %v1843 = vadd.f32 %v1841, %v1842
      %v1844 = vrot.slane %v1843, 1
      %v1845 = vadd.f32 %v1843, %v1844
      %v1846 = vadd.f32 %v1764, %v1768
      %v1847 = vadd.f32 %v1846, %v1772
      %v1848 = vadd.f32 %v1847, %v1776
      %v1849 = vadd.f32 %v1848, %v1780
      %v1850 = vadd.f32 %v1849, %v1784
      %v1851 = vadd.f32 %v1850, %v1788
      %v1852 = vadd.f32 %v1851, %v1792
      %v1853 = vadd.f32 %v1852, %v1796
      %v1854 = vadd.f32 %v1853, %v1800
      %v1855 = vadd.f32 %v1854, %v1804
      %v1856 = vadd.f32 %v1855, %v1808
      %v1857 = vadd.f32 %v1856, %v1812
      %v1858 = vadd.f32 %v1857, %v1816
      %v1859 = vadd.f32 %v1858, %v1820
      %v1860 = vadd.f32 %v1859, %v1824
      %v1861 = vrot.slane %v1860, 4
      %v1862 = vadd.f32 %v1860, %v1861
      %v1863 = vrot.slane %v1862, 2
      %v1864 = vadd.f32 %v1862, %v1863
      %v1865 = vrot.slane %v1864, 1
      %v1866 = vadd.f32 %v1864, %v1865
      %v1867 = vlog2.pop %v1845
      %v1868 = vmul.f32 %v1867, 0.6931472
      %v1869 = vlog2.pop %v1866
      %v1870 = vmul.f32 %v1869, 0.6931472
      %v1871 = vld [vmem:[%s349] sm:$0x3]
      %v1872 = vlaneseq
      %v1873 = vshrl.u32 %v1872, 7
      %v1874 = vsub.s32 0, %v1873
      %v1875 = vrot.slane %v1871, %v1874
      %v1876 = vlaneseq
      %v1877 = vshrl.u32 %v1876, 7
      %v1878 = vsub.s32 1, %v1877
      %v1879 = vrot.slane %v1871, %v1878
      %vm1880 = vcmp.eq.s32.totalorder %v367, %v1875
      %vm1881 = vcmp.eq.s32.totalorder %v367, %v1879
      %vm1882 = vcmp.eq.s32.totalorder %v368, %v1875
      %vm1883 = vcmp.eq.s32.totalorder %v368, %v1879
      %vm1884 = vcmp.eq.s32.totalorder %v369, %v1875
      %vm1885 = vcmp.eq.s32.totalorder %v369, %v1879
      %vm1886 = vcmp.eq.s32.totalorder %v370, %v1875
      %vm1887 = vcmp.eq.s32.totalorder %v370, %v1879
      %vm1888 = vcmp.eq.s32.totalorder %v371, %v1875
      %vm1889 = vcmp.eq.s32.totalorder %v371, %v1879
      %vm1890 = vcmp.eq.s32.totalorder %v372, %v1875
      %vm1891 = vcmp.eq.s32.totalorder %v372, %v1879
      %vm1892 = vcmp.eq.s32.totalorder %v373, %v1875
      %vm1893 = vcmp.eq.s32.totalorder %v373, %v1879
      %vm1894 = vcmp.eq.s32.totalorder %v374, %v1875
      %vm1895 = vcmp.eq.s32.totalorder %v374, %v1879
      %vm1896 = vcmp.eq.s32.totalorder %v375, %v1875
      %vm1897 = vcmp.eq.s32.totalorder %v375, %v1879
      %vm1898 = vcmp.eq.s32.totalorder %v376, %v1875
      %vm1899 = vcmp.eq.s32.totalorder %v376, %v1879
      %vm1900 = vcmp.eq.s32.totalorder %v377, %v1875
      %vm1901 = vcmp.eq.s32.totalorder %v377, %v1879
      %vm1902 = vcmp.eq.s32.totalorder %v378, %v1875
      %vm1903 = vcmp.eq.s32.totalorder %v378, %v1879
      %vm1904 = vcmp.eq.s32.totalorder %v379, %v1875
      %vm1905 = vcmp.eq.s32.totalorder %v379, %v1879
      %vm1906 = vcmp.eq.s32.totalorder %v380, %v1875
      %vm1907 = vcmp.eq.s32.totalorder %v380, %v1879
      %vm1908 = vcmp.eq.s32.totalorder %v381, %v1875
      %vm1909 = vcmp.eq.s32.totalorder %v381, %v1879
      %vm1910 = vcmp.eq.s32.totalorder %v382, %v1875
      %vm1911 = vcmp.eq.s32.totalorder %v382, %v1879
      %v1912 = vsel %vm1880, %v1729, 0.0
      %v1913 = vsel %vm1881, %v1730, 0.0
      %v1914 = vsel %vm1882, %v1731, 0.0
      %v1915 = vsel %vm1883, %v1732, 0.0
      %v1916 = vsel %vm1884, %v1733, 0.0
      %v1917 = vsel %vm1885, %v1734, 0.0
      %v1918 = vsel %vm1886, %v1735, 0.0
      %v1919 = vsel %vm1887, %v1736, 0.0
      %v1920 = vsel %vm1888, %v1737, 0.0
      %v1921 = vsel %vm1889, %v1738, 0.0
      %v1922 = vsel %vm1890, %v1739, 0.0
      %v1923 = vsel %vm1891, %v1740, 0.0
      %v1924 = vsel %vm1892, %v1741, 0.0
      %v1925 = vsel %vm1893, %v1742, 0.0
      %v1926 = vsel %vm1894, %v1743, 0.0
      %v1927 = vsel %vm1895, %v1744, 0.0
      %v1928 = vsel %vm1896, %v1745, 0.0
      %v1929 = vsel %vm1897, %v1746, 0.0
      %v1930 = vsel %vm1898, %v1747, 0.0
      %v1931 = vsel %vm1899, %v1748, 0.0
      %v1932 = vsel %vm1900, %v1749, 0.0
      %v1933 = vsel %vm1901, %v1750, 0.0
      %v1934 = vsel %vm1902, %v1751, 0.0
      %v1935 = vsel %vm1903, %v1752, 0.0
      %v1936 = vsel %vm1904, %v1753, 0.0
      %v1937 = vsel %vm1905, %v1754, 0.0
      %v1938 = vsel %vm1906, %v1755, 0.0
      %v1939 = vsel %vm1907, %v1756, 0.0
      %v1940 = vsel %vm1908, %v1757, 0.0
      %v1941 = vsel %vm1909, %v1758, 0.0
      %v1942 = vsel %vm1910, %v1759, 0.0
      %v1943 = vsel %vm1911, %v1760, 0.0
      %v1944 = vadd.f32 %v1912, %v1914
      %v1945 = vadd.f32 %v1944, %v1916
      %v1946 = vadd.f32 %v1945, %v1918
      %v1947 = vadd.f32 %v1946, %v1920
      %v1948 = vadd.f32 %v1947, %v1922
      %v1949 = vadd.f32 %v1948, %v1924
      %v1950 = vadd.f32 %v1949, %v1926
      %v1951 = vadd.f32 %v1950, %v1928
      %v1952 = vadd.f32 %v1951, %v1930
      %v1953 = vadd.f32 %v1952, %v1932
      %v1954 = vadd.f32 %v1953, %v1934
      %v1955 = vadd.f32 %v1954, %v1936
      %v1956 = vadd.f32 %v1955, %v1938
      %v1957 = vadd.f32 %v1956, %v1940
      %v1958 = vadd.f32 %v1957, %v1942
      %v1959 = vrot.slane %v1958, 4
      %v1960 = vadd.f32 %v1958, %v1959
      %v1961 = vrot.slane %v1960, 2
      %v1962 = vadd.f32 %v1960, %v1961
      %v1963 = vrot.slane %v1962, 1
      %v1964 = vadd.f32 %v1962, %v1963
      %v1965 = vadd.f32 %v1913, %v1915
      %v1966 = vadd.f32 %v1965, %v1917
      %v1967 = vadd.f32 %v1966, %v1919
      %v1968 = vadd.f32 %v1967, %v1921
      %v1969 = vadd.f32 %v1968, %v1923
      %v1970 = vadd.f32 %v1969, %v1925
      %v1971 = vadd.f32 %v1970, %v1927
      %v1972 = vadd.f32 %v1971, %v1929
      %v1973 = vadd.f32 %v1972, %v1931
      %v1974 = vadd.f32 %v1973, %v1933
      %v1975 = vadd.f32 %v1974, %v1935
      %v1976 = vadd.f32 %v1975, %v1937
      %v1977 = vadd.f32 %v1976, %v1939
      %v1978 = vadd.f32 %v1977, %v1941
      %v1979 = vadd.f32 %v1978, %v1943
      %v1980 = vrot.slane %v1979, 4
      %v1981 = vadd.f32 %v1979, %v1980
      %v1982 = vrot.slane %v1981, 2
      %v1983 = vadd.f32 %v1981, %v1982
      %v1984 = vrot.slane %v1983, 1
      %v1985 = vadd.f32 %v1983, %v1984
      %v1986 = vsub.f32 %v1868, %v1964
      %v1987 = vsub.f32 %v1870, %v1985
      %v1988 = vld [vmem:[%s354] sm:$0x3]
      %v1991 = vcombine.low %v1986, %v1987
      %v1993 = vunpack.c.l.s4 1966171168
      %v1994 = vunpack.c.0.s8 %v1993
      %v1995 = vlaneseq
      %v1996 = vshrl.u32 %v1995, 7
      %v1997 = vsub.s32 %v1994, %v1996
      %v1998 = vrot.slane %v1991, %v1997
      %v2000 = vunpack.c.l.s4 1966171168
      %v2001 = vunpack.c.0.s8 %v2000
      %v2002 = vlaneseq
      %v2003 = vshrl.u32 %v2002, 7
      %v2004 = vsub.s32 %v2001, %v2003
      %v2005 = vrot.slane %v1998, %v2004
      %v2007 = vmul.f32 %v1988, %v2005
      %v2008 = vlaneseq
      %vm2009 = vcmp.ge.s32.totalorder %v2008, 0
      %vm2010 = vcmp.lt.s32.totalorder %v2008, 256
      %vm2011 = vmand %vm2009, %vm2010
      %2012 = vst.msk [vmem:[%s359] sm:$0x3] %vm2011, %v2007
      %s2013 = smul.u32 2, %s19
      %p2014 = scmp.lt.s32.totalorder %s2013, 3
      %s2015 = scalar_select %p2014, %s2013, 3
      %s2016 = scalar_lea.vmem %s8, %s2015
      // Predicated region
      $region53: #{diffusion_trainer_forward.1} parent=51 // pred_check
        %p2017 = pneg %p225
      $region54: #{diffusion_trainer_forward.1} parent=51 // pred_check_branch
        %2019 = sbr.rel (%p2017) target = $region56
      $region55: #{diffusion_trainer_forward.1} parent=51 // pred_region
        %s2020 = smul.u32 2, %s19
      $region56: #{diffusion_trainer_forward.1} parent=51 // pred_fallthru
        _
    $region52: #{diffusion_trainer_forward.1} parent=5 // pred_fallthru
      _
    %p2021 = scmp.le.s32.totalorder 2, %s14
    // Predicated region
    $region57: #{diffusion_trainer_forward.1} parent=5 // pred_check
      %p2022 = pneg %p2021
    $region58: #{diffusion_trainer_forward.1} parent=5 // pred_check_branch
      %2024 = sbr.rel (%p2022) target = $region60
    $region59: #{diffusion_trainer_forward.1} parent=5 // pred_region
      %s2025 = ssub.s32 %s14, 2
      // Predicated region
      $region61: #{diffusion_trainer_forward.1} parent=59 // pred_check
        %p2026 = pneg %p231
      $region62: #{diffusion_trainer_forward.1} parent=59 // pred_check_branch
        %2028 = sbr.rel (%p2026) target = $region64
      $region63: #{diffusion_trainer_forward.1} parent=59 // pred_region
        %s2029 = smul.u32 2, %s20
        %p2030 = scmp.lt.s32.totalorder %s2029, 3
        %s2031 = scalar_select %p2030, %s2029, 3
        %s2032 = scalar_lea.vmem %s8, %s2031
      $region64: #{diffusion_trainer_forward.1} parent=59 // pred_fallthru
        _
    $region60: #{diffusion_trainer_forward.1} parent=5 // pred_fallthru
      _
  $region6: #{diffusion_trainer_forward.1} parent=0 // loop_footer
    %s18 = sadd.s32 1, %s14
  $region7: #{diffusion_trainer_forward.1} parent=0 // loop_footer_branch
    %13 = sbr.rel target = $region3
  $region8: #{diffusion_trainer_forward.1} parent=0 // loop_exit
    _

</llo_original>
